<compile_context>
chip_gen: v7x
topology: tpu7x:2x2x1
jax: 0.10.0
libtpu: 0.0.40
codegen_flags: <defaults>
</compile_context>

<pallas_src>
import functools
import math

import jax
import jax.numpy as jnp
from jax.experimental import pallas as pl
from jax.experimental.pallas import tpu as pltpu


def _group_latent_kernel(theta_ref, x_ref, alg_ref, out_ref, *,
                         num_generators, num_features, order, mxu_bf16):
    # theta_ref : [TB, G*F]   x_ref : [TB, F]   alg_ref : [F, G*F]   out_ref : [TB, F]
    G = num_generators
    F = num_features

    # Loop-invariant loads: pulled out of the order loop (loaded/cast once).
    x = x_ref[...]                 # [TB, F] f32
    theta_map = theta_ref[...]     # [TB, G*F] f32
    a_stacked = alg_ref[...]       # [F, G*F] f32
    a_mxu = a_stacked.astype(jnp.bfloat16) if mxu_bf16 else a_stacked

    t = x
    result = x
    # order and G are static Python ints -> fully unrolled.
    for i in range(1, order + 1):
        lhs = t.astype(jnp.bfloat16) if mxu_bf16 else t
        # One wide MXU matmul per order step: [TB, F] @ [F, G*F] -> [TB, G*F].
        ta = jnp.dot(lhs, a_mxu, preferred_element_type=jnp.float32)
        # Per-row, per-generator theta scaling, all in f32 on the VPU.
        scaled = theta_map * ta                                   # [TB, G*F]
        # Sum over generators via static lane slices (F is a multiple of 128,
        # so these slices land on vreg boundaries).
        s = scaled[:, 0:F]
        for j in range(1, G):
            s = s + scaled[:, j * F:(j + 1) * F]
        # 1/i factored out of the generator sum: single multiply per step.
        z = s * jnp.float32(1.0 / i)
        result = result + z
        t = z
    out_ref[...] = result.astype(out_ref.dtype)


def group_latent_forward(theta, x, algebra, order=10, *, block_b=None,
                         mxu_bf16=False):
    """theta: [G, B], x: [B, F], algebra: [G, F, F] -> [B, F]."""
    G, B = theta.shape
    B2, F = x.shape
    assert B == B2 and algebra.shape == (G, F, F)

    # Stack generators along the output/lane axis:
    #   a_stacked[:, j*F:(j+1)*F] == algebra[j]
    a_stacked = jnp.transpose(algebra, (1, 0, 2)).reshape(F, G * F)

    # Per-row theta lane map: theta_map[b, j*F + f] == theta[j, b].
    theta_map = jnp.repeat(theta.T, F, axis=1).astype(jnp.float32)   # [B, G*F]

    # Batch tiling: a parallel grid axis over batch tiles. With B=8 this is a
    # single grid step; for large B it enables pipelining + megacore sharding.
    if block_b is None:
        block_b = B if B <= 256 else 256
    assert B % block_b == 0, "batch must be divisible by block_b"
    grid = (B // block_b,)

    kernel = functools.partial(_group_latent_kernel,
                               num_generators=G, num_features=F,
                               order=order, mxu_bf16=mxu_bf16)

    return pl.pallas_call(
        kernel,
        out_shape=jax.ShapeDtypeStruct((B, F), x.dtype),
        grid=grid,
        in_specs=[
            # theta lane map, tiled over batch.
            pl.BlockSpec((block_b, G * F), lambda i: (i, 0)),
            # x, tiled over batch.
            pl.BlockSpec((block_b, F), lambda i: (i, 0)),
            # Stacked algebra: constant block index -> stays VMEM-resident
            # across batch tiles. (For very large F*G on v7x, tile along the
            # G*F axis and budget vmem_limit_bytes explicitly.)
            pl.BlockSpec((F, G * F), lambda i: (0, 0)),
        ],
        out_specs=pl.BlockSpec((block_b, F), lambda i: (i, 0)),
        compiler_params=pltpu.CompilerParams(
            dimension_semantics=("parallel",)),
    )(theta_map, x, a_stacked)


def group_latent_reference(theta, x, algebra, order=10):
    """Pure-JAX reference mirroring the PyTorch loop exactly."""
    t = x
    result = x
    G = algebra.shape[0]
    for i in range(1, order + 1):
        z = jnp.zeros_like(x)
        for j in range(G):
            z = z + (theta[j][:, None] / i) * (t @ algebra[j])
        result = result + z
        t = z
    return result


def init_algebra(key, num_generators, num_features):
    # Mirrors nn.init.kaiming_uniform_(a=sqrt(5)) on a [F, F] weight:
    #   gain = sqrt(2 / (1 + a^2)) = sqrt(1/3); bound = gain * sqrt(3 / fan_in) = 1/sqrt(F)
    bound = 1.0 / math.sqrt(num_features)
    return jax.random.uniform(
        key, (num_generators, num_features, num_features),
        minval=-bound, maxval=bound, dtype=jnp.float32)


if __name__ == "__main__":
    B = 8            # batch
    F = 128          # num_features
    G = 3            # num_generators
    ORDER = 10

    key = jax.random.PRNGKey(0)
    k_alg, k_x, k_theta = jax.random.split(key, 3)

    algebra = init_algebra(k_alg, G, F)                                   # [G, F, F]
    x = jax.random.normal(k_x, (B, F), dtype=jnp.float32)                 # [B, F]
    theta = jax.random.normal(k_theta, (G, B), dtype=jnp.float32) * 0.1   # [G, B]

    ref = group_latent_reference(theta, x, algebra, order=ORDER)

    # Exact (f32 MXU operands) path — must match the reference tightly.
    out = group_latent_forward(theta, x, algebra, order=ORDER)
    out = jax.block_until_ready(out)
    assert out.shape == (B, F)
    assert jnp.allclose(out, ref, atol=1e-4, rtol=1e-4), "mismatch vs reference (f32)"

    # bf16-MXU path (f32 accumulation) — higher MXU throughput, looser tolerance
    # because the recurrent t = z chain drops mantissa bits each step.
    out_bf16 = group_latent_forward(theta, x, algebra, order=ORDER, mxu_bf16=True)
    out_bf16 = jax.block_until_ready(out_bf16)
    assert jnp.allclose(out_bf16, ref, atol=5e-2, rtol=5e-2), "mismatch vs reference (bf16 MXU)"

    print("KERNEL_OK")
</pallas_src>

<mosaic_0001>
module attributes {stable_mosaic.version = 11 : i64} {
  func.func @_group_latent_kernel(%arg0: i32, %arg1: memref<8x384xf32, #tpu.memory_space<vmem>>, %arg2: memref<8x128xf32, #tpu.memory_space<vmem>>, %arg3: memref<128x384xf32, #tpu.memory_space<vmem>>, %arg4: memref<8x128xf32, #tpu.memory_space<vmem>>) attributes {dimension_semantics = [#tpu.dimension_semantics<parallel>], iteration_bounds = array<i64: 1>, scalar_prefetch = 0 : i64, scratch_operands = 0 : i64, tpu.core_type = #tpu.core_type<tc>, window_params = [{transform_indices = @transform_0, window_bounds = array<i64: 8, 384>}, {transform_indices = @transform_1, window_bounds = array<i64: 8, 128>}, {pipeline_mode = #tpu.pipeline_mode<synchronous>, transform_indices = @transform_2, window_bounds = array<i64: 128, 384>}, {transform_indices = @transform_3, window_bounds = array<i64: 8, 128>}]} {
    %c0 = arith.constant 0 : index
    %c0_0 = arith.constant 0 : index
    %0 = vector.load %arg2[%c0, %c0_0] : memref<8x128xf32, #tpu.memory_space<vmem>>, vector<8x128xf32>
    %c0_1 = arith.constant 0 : index
    %c0_2 = arith.constant 0 : index
    %1 = vector.load %arg1[%c0_1, %c0_2] : memref<8x384xf32, #tpu.memory_space<vmem>>, vector<8x384xf32>
    %c0_3 = arith.constant 0 : index
    %c0_4 = arith.constant 0 : index
    %2 = vector.load %arg3[%c0_3, %c0_4] : memref<128x384xf32, #tpu.memory_space<vmem>>, vector<128x384xf32>
    %cst = arith.constant dense<0.000000e+00> : vector<8x384xf32>
    %3 = tpu.matmul %0, %2, %cst {dimension_numbers = #tpu.dot_dimension_numbers<[1], [0], [0], [1], [0, 0, 1, 1], [], []>} : vector<8x128xf32>, vector<128x384xf32>, vector<8x384xf32> -> vector<8x384xf32>
    %4 = arith.mulf %1, %3 : vector<8x384xf32>
    %5 = vector.extract_strided_slice %4 {offsets = [0, 0], sizes = [8, 128], strides = [1, 1]} : vector<8x384xf32> to vector<8x128xf32>
    %6 = vector.extract_strided_slice %4 {offsets = [0, 128], sizes = [8, 128], strides = [1, 1]} : vector<8x384xf32> to vector<8x128xf32>
    %7 = arith.addf %5, %6 : vector<8x128xf32>
    %8 = vector.extract_strided_slice %4 {offsets = [0, 256], sizes = [8, 128], strides = [1, 1]} : vector<8x384xf32> to vector<8x128xf32>
    %9 = arith.addf %7, %8 : vector<8x128xf32>
    %cst_5 = arith.constant 1.000000e+00 : f32
    %10 = vector.broadcast %cst_5 : f32 to vector<8x128xf32>
    %11 = arith.mulf %9, %10 : vector<8x128xf32>
    %12 = arith.addf %0, %11 : vector<8x128xf32>
    %cst_6 = arith.constant dense<0.000000e+00> : vector<8x384xf32>
    %13 = tpu.matmul %11, %2, %cst_6 {dimension_numbers = #tpu.dot_dimension_numbers<[1], [0], [0], [1], [0, 0, 1, 1], [], []>} : vector<8x128xf32>, vector<128x384xf32>, vector<8x384xf32> -> vector<8x384xf32>
    %14 = arith.mulf %1, %13 : vector<8x384xf32>
    %15 = vector.extract_strided_slice %14 {offsets = [0, 0], sizes = [8, 128], strides = [1, 1]} : vector<8x384xf32> to vector<8x128xf32>
    %16 = vector.extract_strided_slice %14 {offsets = [0, 128], sizes = [8, 128], strides = [1, 1]} : vector<8x384xf32> to vector<8x128xf32>
    %17 = arith.addf %15, %16 : vector<8x128xf32>
    %18 = vector.extract_strided_slice %14 {offsets = [0, 256], sizes = [8, 128], strides = [1, 1]} : vector<8x384xf32> to vector<8x128xf32>
    %19 = arith.addf %17, %18 : vector<8x128xf32>
    %cst_7 = arith.constant 5.000000e-01 : f32
    %20 = vector.broadcast %cst_7 : f32 to vector<8x128xf32>
    %21 = arith.mulf %19, %20 : vector<8x128xf32>
    %22 = arith.addf %12, %21 : vector<8x128xf32>
    %cst_8 = arith.constant dense<0.000000e+00> : vector<8x384xf32>
    %23 = tpu.matmul %21, %2, %cst_8 {dimension_numbers = #tpu.dot_dimension_numbers<[1], [0], [0], [1], [0, 0, 1, 1], [], []>} : vector<8x128xf32>, vector<128x384xf32>, vector<8x384xf32> -> vector<8x384xf32>
    %24 = arith.mulf %1, %23 : vector<8x384xf32>
    %25 = vector.extract_strided_slice %24 {offsets = [0, 0], sizes = [8, 128], strides = [1, 1]} : vector<8x384xf32> to vector<8x128xf32>
    %26 = vector.extract_strided_slice %24 {offsets = [0, 128], sizes = [8, 128], strides = [1, 1]} : vector<8x384xf32> to vector<8x128xf32>
    %27 = arith.addf %25, %26 : vector<8x128xf32>
    %28 = vector.extract_strided_slice %24 {offsets = [0, 256], sizes = [8, 128], strides = [1, 1]} : vector<8x384xf32> to vector<8x128xf32>
    %29 = arith.addf %27, %28 : vector<8x128xf32>
    %cst_9 = arith.constant 0.333333343 : f32
    %30 = vector.broadcast %cst_9 : f32 to vector<8x128xf32>
    %31 = arith.mulf %29, %30 : vector<8x128xf32>
    %32 = arith.addf %22, %31 : vector<8x128xf32>
    %cst_10 = arith.constant dense<0.000000e+00> : vector<8x384xf32>
    %33 = tpu.matmul %31, %2, %cst_10 {dimension_numbers = #tpu.dot_dimension_numbers<[1], [0], [0], [1], [0, 0, 1, 1], [], []>} : vector<8x128xf32>, vector<128x384xf32>, vector<8x384xf32> -> vector<8x384xf32>
    %34 = arith.mulf %1, %33 : vector<8x384xf32>
    %35 = vector.extract_strided_slice %34 {offsets = [0, 0], sizes = [8, 128], strides = [1, 1]} : vector<8x384xf32> to vector<8x128xf32>
    %36 = vector.extract_strided_slice %34 {offsets = [0, 128], sizes = [8, 128], strides = [1, 1]} : vector<8x384xf32> to vector<8x128xf32>
    %37 = arith.addf %35, %36 : vector<8x128xf32>
    %38 = vector.extract_strided_slice %34 {offsets = [0, 256], sizes = [8, 128], strides = [1, 1]} : vector<8x384xf32> to vector<8x128xf32>
    %39 = arith.addf %37, %38 : vector<8x128xf32>
    %cst_11 = arith.constant 2.500000e-01 : f32
    %40 = vector.broadcast %cst_11 : f32 to vector<8x128xf32>
    %41 = arith.mulf %39, %40 : vector<8x128xf32>
    %42 = arith.addf %32, %41 : vector<8x128xf32>
    %cst_12 = arith.constant dense<0.000000e+00> : vector<8x384xf32>
    %43 = tpu.matmul %41, %2, %cst_12 {dimension_numbers = #tpu.dot_dimension_numbers<[1], [0], [0], [1], [0, 0, 1, 1], [], []>} : vector<8x128xf32>, vector<128x384xf32>, vector<8x384xf32> -> vector<8x384xf32>
    %44 = arith.mulf %1, %43 : vector<8x384xf32>
    %45 = vector.extract_strided_slice %44 {offsets = [0, 0], sizes = [8, 128], strides = [1, 1]} : vector<8x384xf32> to vector<8x128xf32>
    %46 = vector.extract_strided_slice %44 {offsets = [0, 128], sizes = [8, 128], strides = [1, 1]} : vector<8x384xf32> to vector<8x128xf32>
    %47 = arith.addf %45, %46 : vector<8x128xf32>
    %48 = vector.extract_strided_slice %44 {offsets = [0, 256], sizes = [8, 128], strides = [1, 1]} : vector<8x384xf32> to vector<8x128xf32>
    %49 = arith.addf %47, %48 : vector<8x128xf32>
    %cst_13 = arith.constant 2.000000e-01 : f32
    %50 = vector.broadcast %cst_13 : f32 to vector<8x128xf32>
    %51 = arith.mulf %49, %50 : vector<8x128xf32>
    %52 = arith.addf %42, %51 : vector<8x128xf32>
    %cst_14 = arith.constant dense<0.000000e+00> : vector<8x384xf32>
    %53 = tpu.matmul %51, %2, %cst_14 {dimension_numbers = #tpu.dot_dimension_numbers<[1], [0], [0], [1], [0, 0, 1, 1], [], []>} : vector<8x128xf32>, vector<128x384xf32>, vector<8x384xf32> -> vector<8x384xf32>
    %54 = arith.mulf %1, %53 : vector<8x384xf32>
    %55 = vector.extract_strided_slice %54 {offsets = [0, 0], sizes = [8, 128], strides = [1, 1]} : vector<8x384xf32> to vector<8x128xf32>
    %56 = vector.extract_strided_slice %54 {offsets = [0, 128], sizes = [8, 128], strides = [1, 1]} : vector<8x384xf32> to vector<8x128xf32>
    %57 = arith.addf %55, %56 : vector<8x128xf32>
    %58 = vector.extract_strided_slice %54 {offsets = [0, 256], sizes = [8, 128], strides = [1, 1]} : vector<8x384xf32> to vector<8x128xf32>
    %59 = arith.addf %57, %58 : vector<8x128xf32>
    %cst_15 = arith.constant 0.166666672 : f32
    %60 = vector.broadcast %cst_15 : f32 to vector<8x128xf32>
    %61 = arith.mulf %59, %60 : vector<8x128xf32>
    %62 = arith.addf %52, %61 : vector<8x128xf32>
    %cst_16 = arith.constant dense<0.000000e+00> : vector<8x384xf32>
    %63 = tpu.matmul %61, %2, %cst_16 {dimension_numbers = #tpu.dot_dimension_numbers<[1], [0], [0], [1], [0, 0, 1, 1], [], []>} : vector<8x128xf32>, vector<128x384xf32>, vector<8x384xf32> -> vector<8x384xf32>
    %64 = arith.mulf %1, %63 : vector<8x384xf32>
    %65 = vector.extract_strided_slice %64 {offsets = [0, 0], sizes = [8, 128], strides = [1, 1]} : vector<8x384xf32> to vector<8x128xf32>
    %66 = vector.extract_strided_slice %64 {offsets = [0, 128], sizes = [8, 128], strides = [1, 1]} : vector<8x384xf32> to vector<8x128xf32>
    %67 = arith.addf %65, %66 : vector<8x128xf32>
    %68 = vector.extract_strided_slice %64 {offsets = [0, 256], sizes = [8, 128], strides = [1, 1]} : vector<8x384xf32> to vector<8x128xf32>
    %69 = arith.addf %67, %68 : vector<8x128xf32>
    %cst_17 = arith.constant 0.142857149 : f32
    %70 = vector.broadcast %cst_17 : f32 to vector<8x128xf32>
    %71 = arith.mulf %69, %70 : vector<8x128xf32>
    %72 = arith.addf %62, %71 : vector<8x128xf32>
    %cst_18 = arith.constant dense<0.000000e+00> : vector<8x384xf32>
    %73 = tpu.matmul %71, %2, %cst_18 {dimension_numbers = #tpu.dot_dimension_numbers<[1], [0], [0], [1], [0, 0, 1, 1], [], []>} : vector<8x128xf32>, vector<128x384xf32>, vector<8x384xf32> -> vector<8x384xf32>
    %74 = arith.mulf %1, %73 : vector<8x384xf32>
    %75 = vector.extract_strided_slice %74 {offsets = [0, 0], sizes = [8, 128], strides = [1, 1]} : vector<8x384xf32> to vector<8x128xf32>
    %76 = vector.extract_strided_slice %74 {offsets = [0, 128], sizes = [8, 128], strides = [1, 1]} : vector<8x384xf32> to vector<8x128xf32>
    %77 = arith.addf %75, %76 : vector<8x128xf32>
    %78 = vector.extract_strided_slice %74 {offsets = [0, 256], sizes = [8, 128], strides = [1, 1]} : vector<8x384xf32> to vector<8x128xf32>
    %79 = arith.addf %77, %78 : vector<8x128xf32>
    %cst_19 = arith.constant 1.250000e-01 : f32
    %80 = vector.broadcast %cst_19 : f32 to vector<8x128xf32>
    %81 = arith.mulf %79, %80 : vector<8x128xf32>
    %82 = arith.addf %72, %81 : vector<8x128xf32>
    %cst_20 = arith.constant dense<0.000000e+00> : vector<8x384xf32>
    %83 = tpu.matmul %81, %2, %cst_20 {dimension_numbers = #tpu.dot_dimension_numbers<[1], [0], [0], [1], [0, 0, 1, 1], [], []>} : vector<8x128xf32>, vector<128x384xf32>, vector<8x384xf32> -> vector<8x384xf32>
    %84 = arith.mulf %1, %83 : vector<8x384xf32>
    %85 = vector.extract_strided_slice %84 {offsets = [0, 0], sizes = [8, 128], strides = [1, 1]} : vector<8x384xf32> to vector<8x128xf32>
    %86 = vector.extract_strided_slice %84 {offsets = [0, 128], sizes = [8, 128], strides = [1, 1]} : vector<8x384xf32> to vector<8x128xf32>
    %87 = arith.addf %85, %86 : vector<8x128xf32>
    %88 = vector.extract_strided_slice %84 {offsets = [0, 256], sizes = [8, 128], strides = [1, 1]} : vector<8x384xf32> to vector<8x128xf32>
    %89 = arith.addf %87, %88 : vector<8x128xf32>
    %cst_21 = arith.constant 0.111111112 : f32
    %90 = vector.broadcast %cst_21 : f32 to vector<8x128xf32>
    %91 = arith.mulf %89, %90 : vector<8x128xf32>
    %92 = arith.addf %82, %91 : vector<8x128xf32>
    %cst_22 = arith.constant dense<0.000000e+00> : vector<8x384xf32>
    %93 = tpu.matmul %91, %2, %cst_22 {dimension_numbers = #tpu.dot_dimension_numbers<[1], [0], [0], [1], [0, 0, 1, 1], [], []>} : vector<8x128xf32>, vector<128x384xf32>, vector<8x384xf32> -> vector<8x384xf32>
    %94 = arith.mulf %1, %93 : vector<8x384xf32>
    %95 = vector.extract_strided_slice %94 {offsets = [0, 0], sizes = [8, 128], strides = [1, 1]} : vector<8x384xf32> to vector<8x128xf32>
    %96 = vector.extract_strided_slice %94 {offsets = [0, 128], sizes = [8, 128], strides = [1, 1]} : vector<8x384xf32> to vector<8x128xf32>
    %97 = arith.addf %95, %96 : vector<8x128xf32>
    %98 = vector.extract_strided_slice %94 {offsets = [0, 256], sizes = [8, 128], strides = [1, 1]} : vector<8x384xf32> to vector<8x128xf32>
    %99 = arith.addf %97, %98 : vector<8x128xf32>
    %cst_23 = arith.constant 1.000000e-01 : f32
    %100 = vector.broadcast %cst_23 : f32 to vector<8x128xf32>
    %101 = arith.mulf %99, %100 : vector<8x128xf32>
    %102 = arith.addf %92, %101 : vector<8x128xf32>
    %c0_24 = arith.constant 0 : index
    %c0_25 = arith.constant 0 : index
    %103 = vector.load %arg4[%c0_24, %c0_25] : memref<8x128xf32, #tpu.memory_space<vmem>>, vector<8x128xf32>
    tpu.vector_store %arg4[%c0_24, %c0_25], %102 {strides = array<i32>} : memref<8x128xf32, #tpu.memory_space<vmem>>, vector<8x128xf32>,
    return
  }
  func.func @transform_0(%arg0: i32) -> (i32, i32) {
    %c0_i32 = arith.constant 0 : i32
    %c0_i32_0 = arith.constant 0 : i32
    return %arg0, %c0_i32 : i32, i32
  }
  func.func @transform_1(%arg0: i32) -> (i32, i32) {
    %c0_i32 = arith.constant 0 : i32
    %c0_i32_0 = arith.constant 0 : i32
    return %arg0, %c0_i32 : i32, i32
  }
  func.func @transform_2(%arg0: i32) -> (i32, i32) {
    %c0_i32 = arith.constant 0 : i32
    %c0_i32_0 = arith.constant 0 : i32
    %c0_i32_1 = arith.constant 0 : i32
    return %c0_i32, %c0_i32_0 : i32, i32
  }
  func.func @transform_3(%arg0: i32) -> (i32, i32) {
    %c0_i32 = arith.constant 0 : i32
    %c0_i32_0 = arith.constant 0 : i32
    return %arg0, %c0_i32 : i32, i32
  }
}

</mosaic_0001>

<llo_original>
// kernel: tpu_custom_call.1
$region0: #{tpu_custom_call.1}
  #allocation0 [shape = 'u32[]', space=smem, size = 0x4, offset = 0x4, fixed_abs, tag = 'smem constant byte address 0x4 - core index']
  #allocation1 [shape = 'u32[144,128]{1,0:T(1,128)}', space=vmem, size = 0x12000, scoped, tag = 'internal scratch']
  %s0 = inlined_call_operand.hbm [shape: f32[8,384], index: 0, kind: input, shape index: {}]
  %s1 = inlined_call_operand.hbm [shape: f32[8,128], index: 1, kind: input, shape index: {}]
  %s2 = inlined_call_operand.hbm [shape: f32[128,384], index: 2, kind: input, shape index: {}]
  %s3 = inlined_call_operand.hbm [shape: f32[8,128], index: 3, kind: output, shape index: {}]
  %s4 = sld [smem:[#allocation0]]
  $region34: #{tpu_custom_call.1} parent=0
    _
  %s6 = ssub.s32 1, %s4
  %s7 = scalar_select 0, %s6, %s4
  $region1: #{tpu_custom_call.1} parent=0
    #allocation2 [shape = 'u8[12288]{0}', space=vmem, size = 0x3000, scoped, tag = 'input window, operand 0, single buffered']
    #allocation3 [shape = 's32[1]{0}', space=sflag, size = 0x4, scoped, tag = 'scoped memory for tpu_custom_call.1']
    #allocation4 [shape = 's32[1]{0}', space=sflag, size = 0x4, scoped, tag = 'scoped memory for tpu_custom_call.1']
    #allocation5 [shape = 'u8[4096]{0}', space=vmem, size = 0x1000, scoped, tag = 'input window, operand 1, single buffered']
    #allocation6 [shape = 's32[1]{0}', space=sflag, size = 0x4, scoped, tag = 'scoped memory for tpu_custom_call.1']
    #allocation7 [shape = 'u8[196608]{0}', space=vmem, size = 0x30000, scoped, tag = 'input window, operand 2, single buffered']
    #allocation8 [shape = 'u8[4096]{0}', space=vmem, size = 0x1000, scoped, tag = 'output window, operand 0, single buffered']
    %8 = vsyncpa [#allocation3], 0
    %9 = vsyncpa [#allocation6], 0
    %10 = vsyncpa [#allocation4], 0
    // Predicated region
    $region2: #{tpu_custom_call.1} parent=1 // pred_check
      _
    $region3: #{tpu_custom_call.1} parent=1 // pred_check_branch
      %12 = sbr.rel (0) target = $region5
    $region4: #{tpu_custom_call.1} parent=1 // pred_region
      %s14 = ssub.s32 384, 384
      %15 = vsyncadd [#allocation3], %s14
      %s17 = sshll.u32 [#allocation2], 4
      %s18 = int_to_ptr.vmem [resolvable:$true] %s17
      %20 = dma.hbm_to_vmem [thread:$0]  %s0, 384, %s18, [#allocation3]
    $region5: #{tpu_custom_call.1} parent=1 // pred_fallthru
      _
    // Predicated region
    $region6: #{tpu_custom_call.1} parent=1 // pred_check
      _
    $region7: #{tpu_custom_call.1} parent=1 // pred_check_branch
      %22 = sbr.rel (0) target = $region9
    $region8: #{tpu_custom_call.1} parent=1 // pred_region
      %s24 = ssub.s32 128, 128
      %25 = vsyncadd [#allocation6], %s24
      %s27 = sshll.u32 [#allocation5], 4
      %s28 = int_to_ptr.vmem [resolvable:$true] %s27
      %30 = dma.hbm_to_vmem [thread:$0]  %s1, 128, %s28, [#allocation6]
    $region9: #{tpu_custom_call.1} parent=1 // pred_fallthru
      _
    // Predicated region
    $region10: #{tpu_custom_call.1} parent=1 // pred_check
      _
    $region11: #{tpu_custom_call.1} parent=1 // pred_check_branch
      %32 = sbr.rel (0) target = $region13
    $region12: #{tpu_custom_call.1} parent=1 // pred_region
      %s34 = ssub.s32 6144, 6144
      %35 = vsyncadd [#allocation6], %s34
      %s36 = sshll.u32 [#allocation7], 4
      %s37 = int_to_ptr.vmem [resolvable:$true] %s36
      %42 = dma.hbm_to_vmem [thread:$0]  %s2, 6144, %s37, [#allocation6], 384, 384, 24
    $region13: #{tpu_custom_call.1} parent=1 // pred_fallthru
      _
    // Predicated region
    $region14: #{tpu_custom_call.1} parent=1 // pred_check
      _
    $region15: #{tpu_custom_call.1} parent=1 // pred_check_branch
      %44 = sbr.rel (0) target = $region17
    $region16: #{tpu_custom_call.1} parent=1 // pred_region
      %45 = dma.done [#allocation3], 384
    $region17: #{tpu_custom_call.1} parent=1 // pred_fallthru
      _
    // Predicated region
    $region18: #{tpu_custom_call.1} parent=1 // pred_check
      _
    $region19: #{tpu_custom_call.1} parent=1 // pred_check_branch
      %47 = sbr.rel (0) target = $region21
    $region20: #{tpu_custom_call.1} parent=1 // pred_region
      %48 = dma.done [#allocation6], 128
    $region21: #{tpu_custom_call.1} parent=1 // pred_fallthru
      _
    // Predicated region
    $region22: #{tpu_custom_call.1} parent=1 // pred_check
      _
    $region23: #{tpu_custom_call.1} parent=1 // pred_check_branch
      %50 = sbr.rel (0) target = $region25
    $region24: #{tpu_custom_call.1} parent=1 // pred_region
      %51 = dma.done [#allocation6], 6144
    $region25: #{tpu_custom_call.1} parent=1 // pred_fallthru
      _
    %v52 = vld [vmem:[#allocation5] sm:$0xff]
    %v53 = vld [vmem:[#allocation2] sm:$0xff]
    %v54 = vld [vmem:[#allocation2 + $0x8] sm:$0xff]
    %v55 = vld [vmem:[#allocation2 + $0x10] sm:$0xff]
    %v56 = vld [vmem:[#allocation7] sm:$0xff]
    %v57 = vld [vmem:[#allocation7 + $0x8] sm:$0xff]
    %v58 = vld [vmem:[#allocation7 + $0x10] sm:$0xff]
    %v59 = vld [vmem:[#allocation7 + $0x18] sm:$0xff]
    %v60 = vld [vmem:[#allocation7 + $0x20] sm:$0xff]
    %v61 = vld [vmem:[#allocation7 + $0x28] sm:$0xff]
    %v62 = vld [vmem:[#allocation7 + $0x30] sm:$0xff]
    %v63 = vld [vmem:[#allocation7 + $0x38] sm:$0xff]
    %v64 = vld [vmem:[#allocation7 + $0x40] sm:$0xff]
    %v65 = vld [vmem:[#allocation7 + $0x48] sm:$0xff]
    %v66 = vld [vmem:[#allocation7 + $0x50] sm:$0xff]
    %v67 = vld [vmem:[#allocation7 + $0x58] sm:$0xff]
    %v68 = vld [vmem:[#allocation7 + $0x60] sm:$0xff]
    %v69 = vld [vmem:[#allocation7 + $0x68] sm:$0xff]
    %v70 = vld [vmem:[#allocation7 + $0x70] sm:$0xff]
    %v71 = vld [vmem:[#allocation7 + $0x78] sm:$0xff]
    %v72 = vld [vmem:[#allocation7 + $0x80] sm:$0xff]
    %v73 = vld [vmem:[#allocation7 + $0x88] sm:$0xff]
    %v74 = vld [vmem:[#allocation7 + $0x90] sm:$0xff]
    %v75 = vld [vmem:[#allocation7 + $0x98] sm:$0xff]
    %v76 = vld [vmem:[#allocation7 + $0xa0] sm:$0xff]
    %v77 = vld [vmem:[#allocation7 + $0xa8] sm:$0xff]
    %v78 = vld [vmem:[#allocation7 + $0xb0] sm:$0xff]
    %v79 = vld [vmem:[#allocation7 + $0xb8] sm:$0xff]
    %v80 = vld [vmem:[#allocation7 + $0xc0] sm:$0xff]
    %v81 = vld [vmem:[#allocation7 + $0xc8] sm:$0xff]
    %v82 = vld [vmem:[#allocation7 + $0xd0] sm:$0xff]
    %v83 = vld [vmem:[#allocation7 + $0xd8] sm:$0xff]
    %v84 = vld [vmem:[#allocation7 + $0xe0] sm:$0xff]
    %v85 = vld [vmem:[#allocation7 + $0xe8] sm:$0xff]
    %v86 = vld [vmem:[#allocation7 + $0xf0] sm:$0xff]
    %v87 = vld [vmem:[#allocation7 + $0xf8] sm:$0xff]
    %v88 = vld [vmem:[#allocation7 + $0x100] sm:$0xff]
    %v89 = vld [vmem:[#allocation7 + $0x108] sm:$0xff]
    %v90 = vld [vmem:[#allocation7 + $0x110] sm:$0xff]
    %v91 = vld [vmem:[#allocation7 + $0x118] sm:$0xff]
    %v92 = vld [vmem:[#allocation7 + $0x120] sm:$0xff]
    %v93 = vld [vmem:[#allocation7 + $0x128] sm:$0xff]
    %v94 = vld [vmem:[#allocation7 + $0x130] sm:$0xff]
    %v95 = vld [vmem:[#allocation7 + $0x138] sm:$0xff]
    %v96 = vld [vmem:[#allocation7 + $0x140] sm:$0xff]
    %v97 = vld [vmem:[#allocation7 + $0x148] sm:$0xff]
    %v98 = vld [vmem:[#allocation7 + $0x150] sm:$0xff]
    %v99 = vld [vmem:[#allocation7 + $0x158] sm:$0xff]
    %v100 = vld [vmem:[#allocation7 + $0x160] sm:$0xff]
    %v101 = vld [vmem:[#allocation7 + $0x168] sm:$0xff]
    %v102 = vld [vmem:[#allocation7 + $0x170] sm:$0xff]
    %v103 = vld [vmem:[#allocation7 + $0x178] sm:$0xff]
    %104 = vmatprep.subr.mxu0 %v57
    %105 = vmatpush1.msra.mxu0 %v56
    %106 = vmatprep.subr.mxu0 %v60
    %107 = vmatpush1.msra.mxu0 %v59
    %108 = vmatprep.subr.mxu0 %v63
    %109 = vmatpush1.msra.mxu0 %v62
    %110 = vmatprep.subr.mxu0 %v66
    %111 = vmatpush1.msra.mxu0 %v65
    %112 = vmatprep.subr.mxu0 %v69
    %113 = vmatpush1.msra.mxu0 %v68
    %114 = vmatprep.subr.mxu0 %v72
    %115 = vmatpush1.msra.mxu0 %v71
    %116 = vmatprep.subr.mxu0 %v75
    %117 = vmatpush1.msra.mxu0 %v74
    %118 = vmatprep.subr.mxu0 %v78
    %119 = vmatpush1.msra.mxu0 %v77
    %120 = vmatprep.subr.mxu0 %v81
    %121 = vmatpush1.msra.mxu0 %v80
    %122 = vmatprep.subr.mxu0 %v84
    %123 = vmatpush1.msra.mxu0 %v83
    %124 = vmatprep.subr.mxu0 %v87
    %125 = vmatpush1.msra.mxu0 %v86
    %126 = vmatprep.subr.mxu0 %v90
    %127 = vmatpush1.msra.mxu0 %v89
    %128 = vmatprep.subr.mxu0 %v93
    %129 = vmatpush1.msra.mxu0 %v92
    %130 = vmatprep.subr.mxu0 %v96
    %131 = vmatpush1.msra.mxu0 %v95
    %132 = vmatprep.subr.mxu0 %v99
    %133 = vmatpush1.msra.mxu0 %v98
    %134 = vmatprep.subr.mxu0 %v102
    %135 = vmatpush1.msra.mxu0 %v101
    %136 = vmatprep.subr.mxu0 0.0
    %137 = vmatpush1.msra.mxu0 0.0
    %138 = vmatprep.subr.mxu0 0.0
    %139 = vmatpush1.msra.mxu0 0.0
    %140 = vmatprep.subr.mxu0 0.0
    %141 = vmatpush1.msra.mxu0 0.0
    %142 = vmatprep.subr.mxu0 0.0
    %143 = vmatpush1.msra.mxu0 0.0
    %144 = vmatprep.subr.mxu0 0.0
    %145 = vmatpush1.msra.mxu0 0.0
    %146 = vmatprep.subr.mxu0 0.0
    %147 = vmatpush1.msra.mxu0 0.0
    %148 = vmatprep.subr.mxu0 0.0
    %149 = vmatpush1.msra.mxu0 0.0
    %150 = vmatprep.subr.mxu0 0.0
    %151 = vmatpush1.msra.mxu0 0.0
    %152 = vmatprep.subr.mxu0 0.0
    %153 = vmatpush1.msra.mxu0 0.0
    %154 = vmatprep.subr.mxu0 0.0
    %155 = vmatpush1.msra.mxu0 0.0
    %156 = vmatprep.subr.mxu0 0.0
    %157 = vmatpush1.msra.mxu0 0.0
    %158 = vmatprep.subr.mxu0 0.0
    %159 = vmatpush1.msra.mxu0 0.0
    %160 = vmatprep.subr.mxu0 0.0
    %161 = vmatpush1.msra.mxu0 0.0
    %162 = vmatprep.subr.mxu0 0.0
    %163 = vmatpush1.msra.mxu0 0.0
    %164 = vmatprep.subr.mxu0 0.0
    %165 = vmatpush1.msra.mxu0 0.0
    %166 = vmatprep.subr.mxu0 0.0
    %167 = vmatpush1.msra.mxu0 0.0
    %168 = vmatprep.mubr.f32.mxu0 0.0
    %169 = vmatmul.mubr.f32.gmra.mrb[0].mxu0 %v52
    %v170 = vpop.f32.mrb[0].mxu0
    %v171 = vadd.f32 0.0, %v170
    %v172 = vpop.f32.mrb[0].mxu0
    %v173 = vadd.f32 0.0, %v172
    %174 = vdwg.mxu0
    %175 = vmatprep.subr.mxu0 0.0
    %176 = vmatpush1.msra.mxu0 %v58
    %177 = vmatprep.subr.mxu0 0.0
    %178 = vmatpush1.msra.mxu0 %v61
    %179 = vmatprep.subr.mxu0 0.0
    %180 = vmatpush1.msra.mxu0 %v64
    %181 = vmatprep.subr.mxu0 0.0
    %182 = vmatpush1.msra.mxu0 %v67
    %183 = vmatprep.subr.mxu0 0.0
    %184 = vmatpush1.msra.mxu0 %v70
    %185 = vmatprep.subr.mxu0 0.0
    %186 = vmatpush1.msra.mxu0 %v73
    %187 = vmatprep.subr.mxu0 0.0
    %188 = vmatpush1.msra.mxu0 %v76
    %189 = vmatprep.subr.mxu0 0.0
    %190 = vmatpush1.msra.mxu0 %v79
    %191 = vmatprep.subr.mxu0 0.0
    %192 = vmatpush1.msra.mxu0 %v82
    %193 = vmatprep.subr.mxu0 0.0
    %194 = vmatpush1.msra.mxu0 %v85
    %195 = vmatprep.subr.mxu0 0.0
    %196 = vmatpush1.msra.mxu0 %v88
    %197 = vmatprep.subr.mxu0 0.0
    %198 = vmatpush1.msra.mxu0 %v91
    %199 = vmatprep.subr.mxu0 0.0
    %200 = vmatpush1.msra.mxu0 %v94
    %201 = vmatprep.subr.mxu0 0.0
    %202 = vmatpush1.msra.mxu0 %v97
    %203 = vmatprep.subr.mxu0 0.0
    %204 = vmatpush1.msra.mxu0 %v100
    %205 = vmatprep.subr.mxu0 0.0
    %206 = vmatpush1.msra.mxu0 %v103
    %207 = vmatprep.subr.mxu0 0.0
    %208 = vmatpush1.msra.mxu0 0.0
    %209 = vmatprep.subr.mxu0 0.0
    %210 = vmatpush1.msra.mxu0 0.0
    %211 = vmatprep.subr.mxu0 0.0
    %212 = vmatpush1.msra.mxu0 0.0
    %213 = vmatprep.subr.mxu0 0.0
    %214 = vmatpush1.msra.mxu0 0.0
    %215 = vmatprep.subr.mxu0 0.0
    %216 = vmatpush1.msra.mxu0 0.0
    %217 = vmatprep.subr.mxu0 0.0
    %218 = vmatpush1.msra.mxu0 0.0
    %219 = vmatprep.subr.mxu0 0.0
    %220 = vmatpush1.msra.mxu0 0.0
    %221 = vmatprep.subr.mxu0 0.0
    %222 = vmatpush1.msra.mxu0 0.0
    %223 = vmatprep.subr.mxu0 0.0
    %224 = vmatpush1.msra.mxu0 0.0
    %225 = vmatprep.subr.mxu0 0.0
    %226 = vmatpush1.msra.mxu0 0.0
    %227 = vmatprep.subr.mxu0 0.0
    %228 = vmatpush1.msra.mxu0 0.0
    %229 = vmatprep.subr.mxu0 0.0
    %230 = vmatpush1.msra.mxu0 0.0
    %231 = vmatprep.subr.mxu0 0.0
    %232 = vmatpush1.msra.mxu0 0.0
    %233 = vmatprep.subr.mxu0 0.0
    %234 = vmatpush1.msra.mxu0 0.0
    %235 = vmatprep.subr.mxu0 0.0
    %236 = vmatpush1.msra.mxu0 0.0
    %237 = vmatprep.subr.mxu0 0.0
    %238 = vmatpush1.msra.mxu0 0.0
    %239 = vmatprep.mubr.f32.mxu0 0.0
    %240 = vmatmul.mubr.f32.gmra.mrb[0].mxu0 %v52
    %v241 = vpop.f32.mrb[0].mxu0
    %v242 = vadd.f32 0.0, %v241
    %v243 = vpop.f32.mrb[0].mxu0
    %244 = vdwg.mxu0
    %v245 = vmul.f32 %v53, %v171
    %v246 = vmul.f32 %v54, %v173
    %v247 = vmul.f32 %v55, %v242
    %v248 = vadd.f32 %v245, %v246
    %v249 = vadd.f32 %v248, %v247
    %v250 = vadd.f32 %v52, %v249
    %251 = vmatprep.subr.mxu0 %v57
    %252 = vmatpush1.msra.mxu0 %v56
    %253 = vmatprep.subr.mxu0 %v60
    %254 = vmatpush1.msra.mxu0 %v59
    %255 = vmatprep.subr.mxu0 %v63
    %256 = vmatpush1.msra.mxu0 %v62
    %257 = vmatprep.subr.mxu0 %v66
    %258 = vmatpush1.msra.mxu0 %v65
    %259 = vmatprep.subr.mxu0 %v69
    %260 = vmatpush1.msra.mxu0 %v68
    %261 = vmatprep.subr.mxu0 %v72
    %262 = vmatpush1.msra.mxu0 %v71
    %263 = vmatprep.subr.mxu0 %v75
    %264 = vmatpush1.msra.mxu0 %v74
    %265 = vmatprep.subr.mxu0 %v78
    %266 = vmatpush1.msra.mxu0 %v77
    %267 = vmatprep.subr.mxu0 %v81
    %268 = vmatpush1.msra.mxu0 %v80
    %269 = vmatprep.subr.mxu0 %v84
    %270 = vmatpush1.msra.mxu0 %v83
    %271 = vmatprep.subr.mxu0 %v87
    %272 = vmatpush1.msra.mxu0 %v86
    %273 = vmatprep.subr.mxu0 %v90
    %274 = vmatpush1.msra.mxu0 %v89
    %275 = vmatprep.subr.mxu0 %v93
    %276 = vmatpush1.msra.mxu0 %v92
    %277 = vmatprep.subr.mxu0 %v96
    %278 = vmatpush1.msra.mxu0 %v95
    %279 = vmatprep.subr.mxu0 %v99
    %280 = vmatpush1.msra.mxu0 %v98
    %281 = vmatprep.subr.mxu0 %v102
    %282 = vmatpush1.msra.mxu0 %v101
    %283 = vmatprep.subr.mxu0 0.0
    %284 = vmatpush1.msra.mxu0 0.0
    %285 = vmatprep.subr.mxu0 0.0
    %286 = vmatpush1.msra.mxu0 0.0
    %287 = vmatprep.subr.mxu0 0.0
    %288 = vmatpush1.msra.mxu0 0.0
    %289 = vmatprep.subr.mxu0 0.0
    %290 = vmatpush1.msra.mxu0 0.0
    %291 = vmatprep.subr.mxu0 0.0
    %292 = vmatpush1.msra.mxu0 0.0
    %293 = vmatprep.subr.mxu0 0.0
    %294 = vmatpush1.msra.mxu0 0.0
    %295 = vmatprep.subr.mxu0 0.0
    %296 = vmatpush1.msra.mxu0 0.0
    %297 = vmatprep.subr.mxu0 0.0
    %298 = vmatpush1.msra.mxu0 0.0
    %299 = vmatprep.subr.mxu0 0.0
    %300 = vmatpush1.msra.mxu0 0.0
    %301 = vmatprep.subr.mxu0 0.0
    %302 = vmatpush1.msra.mxu0 0.0
    %303 = vmatprep.subr.mxu0 0.0
    %304 = vmatpush1.msra.mxu0 0.0
    %305 = vmatprep.subr.mxu0 0.0
    %306 = vmatpush1.msra.mxu0 0.0
    %307 = vmatprep.subr.mxu0 0.0
    %308 = vmatpush1.msra.mxu0 0.0
    %309 = vmatprep.subr.mxu0 0.0
    %310 = vmatpush1.msra.mxu0 0.0
    %311 = vmatprep.subr.mxu0 0.0
    %312 = vmatpush1.msra.mxu0 0.0
    %313 = vmatprep.subr.mxu0 0.0
    %314 = vmatpush1.msra.mxu0 0.0
    %315 = vmatprep.mubr.f32.mxu0 0.0
    %316 = vmatmul.mubr.f32.gmra.mrb[0].mxu0 %v249
    %v317 = vpop.f32.mrb[0].mxu0
    %v318 = vadd.f32 0.0, %v317
    %v319 = vpop.f32.mrb[0].mxu0
    %v320 = vadd.f32 0.0, %v319
    %321 = vdwg.mxu0
    %322 = vmatprep.subr.mxu0 0.0
    %323 = vmatpush1.msra.mxu0 %v58
    %324 = vmatprep.subr.mxu0 0.0
    %325 = vmatpush1.msra.mxu0 %v61
    %326 = vmatprep.subr.mxu0 0.0
    %327 = vmatpush1.msra.mxu0 %v64
    %328 = vmatprep.subr.mxu0 0.0
    %329 = vmatpush1.msra.mxu0 %v67
    %330 = vmatprep.subr.mxu0 0.0
    %331 = vmatpush1.msra.mxu0 %v70
    %332 = vmatprep.subr.mxu0 0.0
    %333 = vmatpush1.msra.mxu0 %v73
    %334 = vmatprep.subr.mxu0 0.0
    %335 = vmatpush1.msra.mxu0 %v76
    %336 = vmatprep.subr.mxu0 0.0
    %337 = vmatpush1.msra.mxu0 %v79
    %338 = vmatprep.subr.mxu0 0.0
    %339 = vmatpush1.msra.mxu0 %v82
    %340 = vmatprep.subr.mxu0 0.0
    %341 = vmatpush1.msra.mxu0 %v85
    %342 = vmatprep.subr.mxu0 0.0
    %343 = vmatpush1.msra.mxu0 %v88
    %344 = vmatprep.subr.mxu0 0.0
    %345 = vmatpush1.msra.mxu0 %v91
    %346 = vmatprep.subr.mxu0 0.0
    %347 = vmatpush1.msra.mxu0 %v94
    %348 = vmatprep.subr.mxu0 0.0
    %349 = vmatpush1.msra.mxu0 %v97
    %350 = vmatprep.subr.mxu0 0.0
    %351 = vmatpush1.msra.mxu0 %v100
    %352 = vmatprep.subr.mxu0 0.0
    %353 = vmatpush1.msra.mxu0 %v103
    %354 = vmatprep.subr.mxu0 0.0
    %355 = vmatpush1.msra.mxu0 0.0
    %356 = vmatprep.subr.mxu0 0.0
    %357 = vmatpush1.msra.mxu0 0.0
    %358 = vmatprep.subr.mxu0 0.0
    %359 = vmatpush1.msra.mxu0 0.0
    %360 = vmatprep.subr.mxu0 0.0
    %361 = vmatpush1.msra.mxu0 0.0
    %362 = vmatprep.subr.mxu0 0.0
    %363 = vmatpush1.msra.mxu0 0.0
    %364 = vmatprep.subr.mxu0 0.0
    %365 = vmatpush1.msra.mxu0 0.0
    %366 = vmatprep.subr.mxu0 0.0
    %367 = vmatpush1.msra.mxu0 0.0
    %368 = vmatprep.subr.mxu0 0.0
    %369 = vmatpush1.msra.mxu0 0.0
    %370 = vmatprep.subr.mxu0 0.0
    %371 = vmatpush1.msra.mxu0 0.0
    %372 = vmatprep.subr.mxu0 0.0
    %373 = vmatpush1.msra.mxu0 0.0
    %374 = vmatprep.subr.mxu0 0.0
    %375 = vmatpush1.msra.mxu0 0.0
    %376 = vmatprep.subr.mxu0 0.0
    %377 = vmatpush1.msra.mxu0 0.0
    %378 = vmatprep.subr.mxu0 0.0
    %379 = vmatpush1.msra.mxu0 0.0
    %380 = vmatprep.subr.mxu0 0.0
    %381 = vmatpush1.msra.mxu0 0.0
    %382 = vmatprep.subr.mxu0 0.0
    %383 = vmatpush1.msra.mxu0 0.0
    %384 = vmatprep.subr.mxu0 0.0
    %385 = vmatpush1.msra.mxu0 0.0
    %386 = vmatprep.mubr.f32.mxu0 0.0
    %387 = vmatmul.mubr.f32.gmra.mrb[0].mxu0 %v249
    %v388 = vpop.f32.mrb[0].mxu0
    %v389 = vadd.f32 0.0, %v388
    %v390 = vpop.f32.mrb[0].mxu0
    %391 = vdwg.mxu0
    %v392 = vmul.f32 %v53, %v318
    %v393 = vmul.f32 %v54, %v320
    %v394 = vmul.f32 %v55, %v389
    %v395 = vadd.f32 %v392, %v393
    %v396 = vadd.f32 %v395, %v394
    %v397 = vmul.f32 %v396, 0.5
    %v398 = vadd.f32 %v250, %v397
    %399 = vmatprep.subr.mxu0 %v57
    %400 = vmatpush1.msra.mxu0 %v56
    %401 = vmatprep.subr.mxu0 %v60
    %402 = vmatpush1.msra.mxu0 %v59
    %403 = vmatprep.subr.mxu0 %v63
    %404 = vmatpush1.msra.mxu0 %v62
    %405 = vmatprep.subr.mxu0 %v66
    %406 = vmatpush1.msra.mxu0 %v65
    %407 = vmatprep.subr.mxu0 %v69
    %408 = vmatpush1.msra.mxu0 %v68
    %409 = vmatprep.subr.mxu0 %v72
    %410 = vmatpush1.msra.mxu0 %v71
    %411 = vmatprep.subr.mxu0 %v75
    %412 = vmatpush1.msra.mxu0 %v74
    %413 = vmatprep.subr.mxu0 %v78
    %414 = vmatpush1.msra.mxu0 %v77
    %415 = vmatprep.subr.mxu0 %v81
    %416 = vmatpush1.msra.mxu0 %v80
    %417 = vmatprep.subr.mxu0 %v84
    %418 = vmatpush1.msra.mxu0 %v83
    %419 = vmatprep.subr.mxu0 %v87
    %420 = vmatpush1.msra.mxu0 %v86
    %421 = vmatprep.subr.mxu0 %v90
    %422 = vmatpush1.msra.mxu0 %v89
    %423 = vmatprep.subr.mxu0 %v93
    %424 = vmatpush1.msra.mxu0 %v92
    %425 = vmatprep.subr.mxu0 %v96
    %426 = vmatpush1.msra.mxu0 %v95
    %427 = vmatprep.subr.mxu0 %v99
    %428 = vmatpush1.msra.mxu0 %v98
    %429 = vmatprep.subr.mxu0 %v102
    %430 = vmatpush1.msra.mxu0 %v101
    %431 = vmatprep.subr.mxu0 0.0
    %432 = vmatpush1.msra.mxu0 0.0
    %433 = vmatprep.subr.mxu0 0.0
    %434 = vmatpush1.msra.mxu0 0.0
    %435 = vmatprep.subr.mxu0 0.0
    %436 = vmatpush1.msra.mxu0 0.0
    %437 = vmatprep.subr.mxu0 0.0
    %438 = vmatpush1.msra.mxu0 0.0
    %439 = vmatprep.subr.mxu0 0.0
    %440 = vmatpush1.msra.mxu0 0.0
    %441 = vmatprep.subr.mxu0 0.0
    %442 = vmatpush1.msra.mxu0 0.0
    %443 = vmatprep.subr.mxu0 0.0
    %444 = vmatpush1.msra.mxu0 0.0
    %445 = vmatprep.subr.mxu0 0.0
    %446 = vmatpush1.msra.mxu0 0.0
    %447 = vmatprep.subr.mxu0 0.0
    %448 = vmatpush1.msra.mxu0 0.0
    %449 = vmatprep.subr.mxu0 0.0
    %450 = vmatpush1.msra.mxu0 0.0
    %451 = vmatprep.subr.mxu0 0.0
    %452 = vmatpush1.msra.mxu0 0.0
    %453 = vmatprep.subr.mxu0 0.0
    %454 = vmatpush1.msra.mxu0 0.0
    %455 = vmatprep.subr.mxu0 0.0
    %456 = vmatpush1.msra.mxu0 0.0
    %457 = vmatprep.subr.mxu0 0.0
    %458 = vmatpush1.msra.mxu0 0.0
    %459 = vmatprep.subr.mxu0 0.0
    %460 = vmatpush1.msra.mxu0 0.0
    %461 = vmatprep.subr.mxu0 0.0
    %462 = vmatpush1.msra.mxu0 0.0
    %463 = vmatprep.mubr.f32.mxu0 0.0
    %464 = vmatmul.mubr.f32.gmra.mrb[0].mxu0 %v397
    %v465 = vpop.f32.mrb[0].mxu0
    %v466 = vadd.f32 0.0, %v465
    %v467 = vpop.f32.mrb[0].mxu0
    %v468 = vadd.f32 0.0, %v467
    %469 = vdwg.mxu0
    %470 = vmatprep.subr.mxu0 0.0
    %471 = vmatpush1.msra.mxu0 %v58
    %472 = vmatprep.subr.mxu0 0.0
    %473 = vmatpush1.msra.mxu0 %v61
    %474 = vmatprep.subr.mxu0 0.0
    %475 = vmatpush1.msra.mxu0 %v64
    %476 = vmatprep.subr.mxu0 0.0
    %477 = vmatpush1.msra.mxu0 %v67
    %478 = vmatprep.subr.mxu0 0.0
    %479 = vmatpush1.msra.mxu0 %v70
    %480 = vmatprep.subr.mxu0 0.0
    %481 = vmatpush1.msra.mxu0 %v73
    %482 = vmatprep.subr.mxu0 0.0
    %483 = vmatpush1.msra.mxu0 %v76
    %484 = vmatprep.subr.mxu0 0.0
    %485 = vmatpush1.msra.mxu0 %v79
    %486 = vmatprep.subr.mxu0 0.0
    %487 = vmatpush1.msra.mxu0 %v82
    %488 = vmatprep.subr.mxu0 0.0
    %489 = vmatpush1.msra.mxu0 %v85
    %490 = vmatprep.subr.mxu0 0.0
    %491 = vmatpush1.msra.mxu0 %v88
    %492 = vmatprep.subr.mxu0 0.0
    %493 = vmatpush1.msra.mxu0 %v91
    %494 = vmatprep.subr.mxu0 0.0
    %495 = vmatpush1.msra.mxu0 %v94
    %496 = vmatprep.subr.mxu0 0.0
    %497 = vmatpush1.msra.mxu0 %v97
    %498 = vmatprep.subr.mxu0 0.0
    %499 = vmatpush1.msra.mxu0 %v100
    %500 = vmatprep.subr.mxu0 0.0
    %501 = vmatpush1.msra.mxu0 %v103
    %502 = vmatprep.subr.mxu0 0.0
    %503 = vmatpush1.msra.mxu0 0.0
    %504 = vmatprep.subr.mxu0 0.0
    %505 = vmatpush1.msra.mxu0 0.0
    %506 = vmatprep.subr.mxu0 0.0
    %507 = vmatpush1.msra.mxu0 0.0
    %508 = vmatprep.subr.mxu0 0.0
    %509 = vmatpush1.msra.mxu0 0.0
    %510 = vmatprep.subr.mxu0 0.0
    %511 = vmatpush1.msra.mxu0 0.0
    %512 = vmatprep.subr.mxu0 0.0
    %513 = vmatpush1.msra.mxu0 0.0
    %514 = vmatprep.subr.mxu0 0.0
    %515 = vmatpush1.msra.mxu0 0.0
    %516 = vmatprep.subr.mxu0 0.0
    %517 = vmatpush1.msra.mxu0 0.0
    %518 = vmatprep.subr.mxu0 0.0
    %519 = vmatpush1.msra.mxu0 0.0
    %520 = vmatprep.subr.mxu0 0.0
    %521 = vmatpush1.msra.mxu0 0.0
    %522 = vmatprep.subr.mxu0 0.0
    %523 = vmatpush1.msra.mxu0 0.0
    %524 = vmatprep.subr.mxu0 0.0
    %525 = vmatpush1.msra.mxu0 0.0
    %526 = vmatprep.subr.mxu0 0.0
    %527 = vmatpush1.msra.mxu0 0.0
    %528 = vmatprep.subr.mxu0 0.0
    %529 = vmatpush1.msra.mxu0 0.0
    %530 = vmatprep.subr.mxu0 0.0
    %531 = vmatpush1.msra.mxu0 0.0
    %532 = vmatprep.subr.mxu0 0.0
    %533 = vmatpush1.msra.mxu0 0.0
    %534 = vmatprep.mubr.f32.mxu0 0.0
    %535 = vmatmul.mubr.f32.gmra.mrb[0].mxu0 %v397
    %v536 = vpop.f32.mrb[0].mxu0
    %v537 = vadd.f32 0.0, %v536
    %v538 = vpop.f32.mrb[0].mxu0
    %539 = vdwg.mxu0
    %v540 = vmul.f32 %v53, %v466
    %v541 = vmul.f32 %v54, %v468
    %v542 = vmul.f32 %v55, %v537
    %v543 = vadd.f32 %v540, %v541
    %v544 = vadd.f32 %v543, %v542
    %v545 = vmul.f32 %v544, 0.33333334
    %v546 = vadd.f32 %v398, %v545
    %547 = vmatprep.subr.mxu0 %v57
    %548 = vmatpush1.msra.mxu0 %v56
    %549 = vmatprep.subr.mxu0 %v60
    %550 = vmatpush1.msra.mxu0 %v59
    %551 = vmatprep.subr.mxu0 %v63
    %552 = vmatpush1.msra.mxu0 %v62
    %553 = vmatprep.subr.mxu0 %v66
    %554 = vmatpush1.msra.mxu0 %v65
    %555 = vmatprep.subr.mxu0 %v69
    %556 = vmatpush1.msra.mxu0 %v68
    %557 = vmatprep.subr.mxu0 %v72
    %558 = vmatpush1.msra.mxu0 %v71
    %559 = vmatprep.subr.mxu0 %v75
    %560 = vmatpush1.msra.mxu0 %v74
    %561 = vmatprep.subr.mxu0 %v78
    %562 = vmatpush1.msra.mxu0 %v77
    %563 = vmatprep.subr.mxu0 %v81
    %564 = vmatpush1.msra.mxu0 %v80
    %565 = vmatprep.subr.mxu0 %v84
    %566 = vmatpush1.msra.mxu0 %v83
    %567 = vmatprep.subr.mxu0 %v87
    %568 = vmatpush1.msra.mxu0 %v86
    %569 = vmatprep.subr.mxu0 %v90
    %570 = vmatpush1.msra.mxu0 %v89
    %571 = vmatprep.subr.mxu0 %v93
    %572 = vmatpush1.msra.mxu0 %v92
    %573 = vmatprep.subr.mxu0 %v96
    %574 = vmatpush1.msra.mxu0 %v95
    %575 = vmatprep.subr.mxu0 %v99
    %576 = vmatpush1.msra.mxu0 %v98
    %577 = vmatprep.subr.mxu0 %v102
    %578 = vmatpush1.msra.mxu0 %v101
    %579 = vmatprep.subr.mxu0 0.0
    %580 = vmatpush1.msra.mxu0 0.0
    %581 = vmatprep.subr.mxu0 0.0
    %582 = vmatpush1.msra.mxu0 0.0
    %583 = vmatprep.subr.mxu0 0.0
    %584 = vmatpush1.msra.mxu0 0.0
    %585 = vmatprep.subr.mxu0 0.0
    %586 = vmatpush1.msra.mxu0 0.0
    %587 = vmatprep.subr.mxu0 0.0
    %588 = vmatpush1.msra.mxu0 0.0
    %589 = vmatprep.subr.mxu0 0.0
    %590 = vmatpush1.msra.mxu0 0.0
    %591 = vmatprep.subr.mxu0 0.0
    %592 = vmatpush1.msra.mxu0 0.0
    %593 = vmatprep.subr.mxu0 0.0
    %594 = vmatpush1.msra.mxu0 0.0
    %595 = vmatprep.subr.mxu0 0.0
    %596 = vmatpush1.msra.mxu0 0.0
    %597 = vmatprep.subr.mxu0 0.0
    %598 = vmatpush1.msra.mxu0 0.0
    %599 = vmatprep.subr.mxu0 0.0
    %600 = vmatpush1.msra.mxu0 0.0
    %601 = vmatprep.subr.mxu0 0.0
    %602 = vmatpush1.msra.mxu0 0.0
    %603 = vmatprep.subr.mxu0 0.0
    %604 = vmatpush1.msra.mxu0 0.0
    %605 = vmatprep.subr.mxu0 0.0
    %606 = vmatpush1.msra.mxu0 0.0
    %607 = vmatprep.subr.mxu0 0.0
    %608 = vmatpush1.msra.mxu0 0.0
    %609 = vmatprep.subr.mxu0 0.0
    %610 = vmatpush1.msra.mxu0 0.0
    %611 = vmatprep.mubr.f32.mxu0 0.0
    %612 = vmatmul.mubr.f32.gmra.mrb[0].mxu0 %v545
    %v613 = vpop.f32.mrb[0].mxu0
    %v614 = vadd.f32 0.0, %v613
    %v615 = vpop.f32.mrb[0].mxu0
    %v616 = vadd.f32 0.0, %v615
    %617 = vdwg.mxu0
    %618 = vmatprep.subr.mxu0 0.0
    %619 = vmatpush1.msra.mxu0 %v58
    %620 = vmatprep.subr.mxu0 0.0
    %621 = vmatpush1.msra.mxu0 %v61
    %622 = vmatprep.subr.mxu0 0.0
    %623 = vmatpush1.msra.mxu0 %v64
    %624 = vmatprep.subr.mxu0 0.0
    %625 = vmatpush1.msra.mxu0 %v67
    %626 = vmatprep.subr.mxu0 0.0
    %627 = vmatpush1.msra.mxu0 %v70
    %628 = vmatprep.subr.mxu0 0.0
    %629 = vmatpush1.msra.mxu0 %v73
    %630 = vmatprep.subr.mxu0 0.0
    %631 = vmatpush1.msra.mxu0 %v76
    %632 = vmatprep.subr.mxu0 0.0
    %633 = vmatpush1.msra.mxu0 %v79
    %634 = vmatprep.subr.mxu0 0.0
    %635 = vmatpush1.msra.mxu0 %v82
    %636 = vmatprep.subr.mxu0 0.0
    %637 = vmatpush1.msra.mxu0 %v85
    %638 = vmatprep.subr.mxu0 0.0
    %639 = vmatpush1.msra.mxu0 %v88
    %640 = vmatprep.subr.mxu0 0.0
    %641 = vmatpush1.msra.mxu0 %v91
    %642 = vmatprep.subr.mxu0 0.0
    %643 = vmatpush1.msra.mxu0 %v94
    %644 = vmatprep.subr.mxu0 0.0
    %645 = vmatpush1.msra.mxu0 %v97
    %646 = vmatprep.subr.mxu0 0.0
    %647 = vmatpush1.msra.mxu0 %v100
    %648 = vmatprep.subr.mxu0 0.0
    %649 = vmatpush1.msra.mxu0 %v103
    %650 = vmatprep.subr.mxu0 0.0
    %651 = vmatpush1.msra.mxu0 0.0
    %652 = vmatprep.subr.mxu0 0.0
    %653 = vmatpush1.msra.mxu0 0.0
    %654 = vmatprep.subr.mxu0 0.0
    %655 = vmatpush1.msra.mxu0 0.0
    %656 = vmatprep.subr.mxu0 0.0
    %657 = vmatpush1.msra.mxu0 0.0
    %658 = vmatprep.subr.mxu0 0.0
    %659 = vmatpush1.msra.mxu0 0.0
    %660 = vmatprep.subr.mxu0 0.0
    %661 = vmatpush1.msra.mxu0 0.0
    %662 = vmatprep.subr.mxu0 0.0
    %663 = vmatpush1.msra.mxu0 0.0
    %664 = vmatprep.subr.mxu0 0.0
    %665 = vmatpush1.msra.mxu0 0.0
    %666 = vmatprep.subr.mxu0 0.0
    %667 = vmatpush1.msra.mxu0 0.0
    %668 = vmatprep.subr.mxu0 0.0
    %669 = vmatpush1.msra.mxu0 0.0
    %670 = vmatprep.subr.mxu0 0.0
    %671 = vmatpush1.msra.mxu0 0.0
    %672 = vmatprep.subr.mxu0 0.0
    %673 = vmatpush1.msra.mxu0 0.0
    %674 = vmatprep.subr.mxu0 0.0
    %675 = vmatpush1.msra.mxu0 0.0
    %676 = vmatprep.subr.mxu0 0.0
    %677 = vmatpush1.msra.mxu0 0.0
    %678 = vmatprep.subr.mxu0 0.0
    %679 = vmatpush1.msra.mxu0 0.0
    %680 = vmatprep.subr.mxu0 0.0
    %681 = vmatpush1.msra.mxu0 0.0
    %682 = vmatprep.mubr.f32.mxu0 0.0
    %683 = vmatmul.mubr.f32.gmra.mrb[0].mxu0 %v545
    %v684 = vpop.f32.mrb[0].mxu0
    %v685 = vadd.f32 0.0, %v684
    %v686 = vpop.f32.mrb[0].mxu0
    %687 = vdwg.mxu0
    %v688 = vmul.f32 %v53, %v614
    %v689 = vmul.f32 %v54, %v616
    %v690 = vmul.f32 %v55, %v685
    %v691 = vadd.f32 %v688, %v689
    %v692 = vadd.f32 %v691, %v690
    %v693 = vmul.f32 %v692, 0.25
    %v694 = vadd.f32 %v546, %v693
    %695 = vmatprep.subr.mxu0 %v57
    %696 = vmatpush1.msra.mxu0 %v56
    %697 = vmatprep.subr.mxu0 %v60
    %698 = vmatpush1.msra.mxu0 %v59
    %699 = vmatprep.subr.mxu0 %v63
    %700 = vmatpush1.msra.mxu0 %v62
    %701 = vmatprep.subr.mxu0 %v66
    %702 = vmatpush1.msra.mxu0 %v65
    %703 = vmatprep.subr.mxu0 %v69
    %704 = vmatpush1.msra.mxu0 %v68
    %705 = vmatprep.subr.mxu0 %v72
    %706 = vmatpush1.msra.mxu0 %v71
    %707 = vmatprep.subr.mxu0 %v75
    %708 = vmatpush1.msra.mxu0 %v74
    %709 = vmatprep.subr.mxu0 %v78
    %710 = vmatpush1.msra.mxu0 %v77
    %711 = vmatprep.subr.mxu0 %v81
    %712 = vmatpush1.msra.mxu0 %v80
    %713 = vmatprep.subr.mxu0 %v84
    %714 = vmatpush1.msra.mxu0 %v83
    %715 = vmatprep.subr.mxu0 %v87
    %716 = vmatpush1.msra.mxu0 %v86
    %717 = vmatprep.subr.mxu0 %v90
    %718 = vmatpush1.msra.mxu0 %v89
    %719 = vmatprep.subr.mxu0 %v93
    %720 = vmatpush1.msra.mxu0 %v92
    %721 = vmatprep.subr.mxu0 %v96
    %722 = vmatpush1.msra.mxu0 %v95
    %723 = vmatprep.subr.mxu0 %v99
    %724 = vmatpush1.msra.mxu0 %v98
    %725 = vmatprep.subr.mxu0 %v102
    %726 = vmatpush1.msra.mxu0 %v101
    %727 = vmatprep.subr.mxu0 0.0
    %728 = vmatpush1.msra.mxu0 0.0
    %729 = vmatprep.subr.mxu0 0.0
    %730 = vmatpush1.msra.mxu0 0.0
    %731 = vmatprep.subr.mxu0 0.0
    %732 = vmatpush1.msra.mxu0 0.0
    %733 = vmatprep.subr.mxu0 0.0
    %734 = vmatpush1.msra.mxu0 0.0
    %735 = vmatprep.subr.mxu0 0.0
    %736 = vmatpush1.msra.mxu0 0.0
    %737 = vmatprep.subr.mxu0 0.0
    %738 = vmatpush1.msra.mxu0 0.0
    %739 = vmatprep.subr.mxu0 0.0
    %740 = vmatpush1.msra.mxu0 0.0
    %741 = vmatprep.subr.mxu0 0.0
    %742 = vmatpush1.msra.mxu0 0.0
    %743 = vmatprep.subr.mxu0 0.0
    %744 = vmatpush1.msra.mxu0 0.0
    %745 = vmatprep.subr.mxu0 0.0
    %746 = vmatpush1.msra.mxu0 0.0
    %747 = vmatprep.subr.mxu0 0.0
    %748 = vmatpush1.msra.mxu0 0.0
    %749 = vmatprep.subr.mxu0 0.0
    %750 = vmatpush1.msra.mxu0 0.0
    %751 = vmatprep.subr.mxu0 0.0
    %752 = vmatpush1.msra.mxu0 0.0
    %753 = vmatprep.subr.mxu0 0.0
    %754 = vmatpush1.msra.mxu0 0.0
    %755 = vmatprep.subr.mxu0 0.0
    %756 = vmatpush1.msra.mxu0 0.0
    %757 = vmatprep.subr.mxu0 0.0
    %758 = vmatpush1.msra.mxu0 0.0
    %759 = vmatprep.mubr.f32.mxu0 0.0
    %760 = vmatmul.mubr.f32.gmra.mrb[0].mxu0 %v693
    %v761 = vpop.f32.mrb[0].mxu0
    %v762 = vadd.f32 0.0, %v761
    %v763 = vpop.f32.mrb[0].mxu0
    %v764 = vadd.f32 0.0, %v763
    %765 = vdwg.mxu0
    %766 = vmatprep.subr.mxu0 0.0
    %767 = vmatpush1.msra.mxu0 %v58
    %768 = vmatprep.subr.mxu0 0.0
    %769 = vmatpush1.msra.mxu0 %v61
    %770 = vmatprep.subr.mxu0 0.0
    %771 = vmatpush1.msra.mxu0 %v64
    %772 = vmatprep.subr.mxu0 0.0
    %773 = vmatpush1.msra.mxu0 %v67
    %774 = vmatprep.subr.mxu0 0.0
    %775 = vmatpush1.msra.mxu0 %v70
    %776 = vmatprep.subr.mxu0 0.0
    %777 = vmatpush1.msra.mxu0 %v73
    %778 = vmatprep.subr.mxu0 0.0
    %779 = vmatpush1.msra.mxu0 %v76
    %780 = vmatprep.subr.mxu0 0.0
    %781 = vmatpush1.msra.mxu0 %v79
    %782 = vmatprep.subr.mxu0 0.0
    %783 = vmatpush1.msra.mxu0 %v82
    %784 = vmatprep.subr.mxu0 0.0
    %785 = vmatpush1.msra.mxu0 %v85
    %786 = vmatprep.subr.mxu0 0.0
    %787 = vmatpush1.msra.mxu0 %v88
    %788 = vmatprep.subr.mxu0 0.0
    %789 = vmatpush1.msra.mxu0 %v91
    %790 = vmatprep.subr.mxu0 0.0
    %791 = vmatpush1.msra.mxu0 %v94
    %792 = vmatprep.subr.mxu0 0.0
    %793 = vmatpush1.msra.mxu0 %v97
    %794 = vmatprep.subr.mxu0 0.0
    %795 = vmatpush1.msra.mxu0 %v100
    %796 = vmatprep.subr.mxu0 0.0
    %797 = vmatpush1.msra.mxu0 %v103
    %798 = vmatprep.subr.mxu0 0.0
    %799 = vmatpush1.msra.mxu0 0.0
    %800 = vmatprep.subr.mxu0 0.0
    %801 = vmatpush1.msra.mxu0 0.0
    %802 = vmatprep.subr.mxu0 0.0
    %803 = vmatpush1.msra.mxu0 0.0
    %804 = vmatprep.subr.mxu0 0.0
    %805 = vmatpush1.msra.mxu0 0.0
    %806 = vmatprep.subr.mxu0 0.0
    %807 = vmatpush1.msra.mxu0 0.0
    %808 = vmatprep.subr.mxu0 0.0
    %809 = vmatpush1.msra.mxu0 0.0
    %810 = vmatprep.subr.mxu0 0.0
    %811 = vmatpush1.msra.mxu0 0.0
    %812 = vmatprep.subr.mxu0 0.0
    %813 = vmatpush1.msra.mxu0 0.0
    %814 = vmatprep.subr.mxu0 0.0
    %815 = vmatpush1.msra.mxu0 0.0
    %816 = vmatprep.subr.mxu0 0.0
    %817 = vmatpush1.msra.mxu0 0.0
    %818 = vmatprep.subr.mxu0 0.0
    %819 = vmatpush1.msra.mxu0 0.0
    %820 = vmatprep.subr.mxu0 0.0
    %821 = vmatpush1.msra.mxu0 0.0
    %822 = vmatprep.subr.mxu0 0.0
    %823 = vmatpush1.msra.mxu0 0.0
    %824 = vmatprep.subr.mxu0 0.0
    %825 = vmatpush1.msra.mxu0 0.0
    %826 = vmatprep.subr.mxu0 0.0
    %827 = vmatpush1.msra.mxu0 0.0
    %828 = vmatprep.subr.mxu0 0.0
    %829 = vmatpush1.msra.mxu0 0.0
    %830 = vmatprep.mubr.f32.mxu0 0.0
    %831 = vmatmul.mubr.f32.gmra.mrb[0].mxu0 %v693
    %v832 = vpop.f32.mrb[0].mxu0
    %v833 = vadd.f32 0.0, %v832
    %v834 = vpop.f32.mrb[0].mxu0
    %835 = vdwg.mxu0
    %v836 = vmul.f32 %v53, %v762
    %v837 = vmul.f32 %v54, %v764
    %v838 = vmul.f32 %v55, %v833
    %v839 = vadd.f32 %v836, %v837
    %v840 = vadd.f32 %v839, %v838
    %v841 = vmul.f32 %v840, 0.2
    %v842 = vadd.f32 %v694, %v841
    %843 = vmatprep.subr.mxu0 %v57
    %844 = vmatpush1.msra.mxu0 %v56
    %845 = vmatprep.subr.mxu0 %v60
    %846 = vmatpush1.msra.mxu0 %v59
    %847 = vmatprep.subr.mxu0 %v63
    %848 = vmatpush1.msra.mxu0 %v62
    %849 = vmatprep.subr.mxu0 %v66
    %850 = vmatpush1.msra.mxu0 %v65
    %851 = vmatprep.subr.mxu0 %v69
    %852 = vmatpush1.msra.mxu0 %v68
    %853 = vmatprep.subr.mxu0 %v72
    %854 = vmatpush1.msra.mxu0 %v71
    %855 = vmatprep.subr.mxu0 %v75
    %856 = vmatpush1.msra.mxu0 %v74
    %857 = vmatprep.subr.mxu0 %v78
    %858 = vmatpush1.msra.mxu0 %v77
    %859 = vmatprep.subr.mxu0 %v81
    %860 = vmatpush1.msra.mxu0 %v80
    %861 = vmatprep.subr.mxu0 %v84
    %862 = vmatpush1.msra.mxu0 %v83
    %863 = vmatprep.subr.mxu0 %v87
    %864 = vmatpush1.msra.mxu0 %v86
    %865 = vmatprep.subr.mxu0 %v90
    %866 = vmatpush1.msra.mxu0 %v89
    %867 = vmatprep.subr.mxu0 %v93
    %868 = vmatpush1.msra.mxu0 %v92
    %869 = vmatprep.subr.mxu0 %v96
    %870 = vmatpush1.msra.mxu0 %v95
    %871 = vmatprep.subr.mxu0 %v99
    %872 = vmatpush1.msra.mxu0 %v98
    %873 = vmatprep.subr.mxu0 %v102
    %874 = vmatpush1.msra.mxu0 %v101
    %875 = vmatprep.subr.mxu0 0.0
    %876 = vmatpush1.msra.mxu0 0.0
    %877 = vmatprep.subr.mxu0 0.0
    %878 = vmatpush1.msra.mxu0 0.0
    %879 = vmatprep.subr.mxu0 0.0
    %880 = vmatpush1.msra.mxu0 0.0
    %881 = vmatprep.subr.mxu0 0.0
    %882 = vmatpush1.msra.mxu0 0.0
    %883 = vmatprep.subr.mxu0 0.0
    %884 = vmatpush1.msra.mxu0 0.0
    %885 = vmatprep.subr.mxu0 0.0
    %886 = vmatpush1.msra.mxu0 0.0
    %887 = vmatprep.subr.mxu0 0.0
    %888 = vmatpush1.msra.mxu0 0.0
    %889 = vmatprep.subr.mxu0 0.0
    %890 = vmatpush1.msra.mxu0 0.0
    %891 = vmatprep.subr.mxu0 0.0
    %892 = vmatpush1.msra.mxu0 0.0
    %893 = vmatprep.subr.mxu0 0.0
    %894 = vmatpush1.msra.mxu0 0.0
    %895 = vmatprep.subr.mxu0 0.0
    %896 = vmatpush1.msra.mxu0 0.0
    %897 = vmatprep.subr.mxu0 0.0
    %898 = vmatpush1.msra.mxu0 0.0
    %899 = vmatprep.subr.mxu0 0.0
    %900 = vmatpush1.msra.mxu0 0.0
    %901 = vmatprep.subr.mxu0 0.0
    %902 = vmatpush1.msra.mxu0 0.0
    %903 = vmatprep.subr.mxu0 0.0
    %904 = vmatpush1.msra.mxu0 0.0
    %905 = vmatprep.subr.mxu0 0.0
    %906 = vmatpush1.msra.mxu0 0.0
    %907 = vmatprep.mubr.f32.mxu0 0.0
    %908 = vmatmul.mubr.f32.gmra.mrb[0].mxu0 %v841
    %v909 = vpop.f32.mrb[0].mxu0
    %v910 = vadd.f32 0.0, %v909
    %v911 = vpop.f32.mrb[0].mxu0
    %v912 = vadd.f32 0.0, %v911
    %913 = vdwg.mxu0
    %914 = vmatprep.subr.mxu0 0.0
    %915 = vmatpush1.msra.mxu0 %v58
    %916 = vmatprep.subr.mxu0 0.0
    %917 = vmatpush1.msra.mxu0 %v61
    %918 = vmatprep.subr.mxu0 0.0
    %919 = vmatpush1.msra.mxu0 %v64
    %920 = vmatprep.subr.mxu0 0.0
    %921 = vmatpush1.msra.mxu0 %v67
    %922 = vmatprep.subr.mxu0 0.0
    %923 = vmatpush1.msra.mxu0 %v70
    %924 = vmatprep.subr.mxu0 0.0
    %925 = vmatpush1.msra.mxu0 %v73
    %926 = vmatprep.subr.mxu0 0.0
    %927 = vmatpush1.msra.mxu0 %v76
    %928 = vmatprep.subr.mxu0 0.0
    %929 = vmatpush1.msra.mxu0 %v79
    %930 = vmatprep.subr.mxu0 0.0
    %931 = vmatpush1.msra.mxu0 %v82
    %932 = vmatprep.subr.mxu0 0.0
    %933 = vmatpush1.msra.mxu0 %v85
    %934 = vmatprep.subr.mxu0 0.0
    %935 = vmatpush1.msra.mxu0 %v88
    %936 = vmatprep.subr.mxu0 0.0
    %937 = vmatpush1.msra.mxu0 %v91
    %938 = vmatprep.subr.mxu0 0.0
    %939 = vmatpush1.msra.mxu0 %v94
    %940 = vmatprep.subr.mxu0 0.0
    %941 = vmatpush1.msra.mxu0 %v97
    %942 = vmatprep.subr.mxu0 0.0
    %943 = vmatpush1.msra.mxu0 %v100
    %944 = vmatprep.subr.mxu0 0.0
    %945 = vmatpush1.msra.mxu0 %v103
    %946 = vmatprep.subr.mxu0 0.0
    %947 = vmatpush1.msra.mxu0 0.0
    %948 = vmatprep.subr.mxu0 0.0
    %949 = vmatpush1.msra.mxu0 0.0
    %950 = vmatprep.subr.mxu0 0.0
    %951 = vmatpush1.msra.mxu0 0.0
    %952 = vmatprep.subr.mxu0 0.0
    %953 = vmatpush1.msra.mxu0 0.0
    %954 = vmatprep.subr.mxu0 0.0
    %955 = vmatpush1.msra.mxu0 0.0
    %956 = vmatprep.subr.mxu0 0.0
    %957 = vmatpush1.msra.mxu0 0.0
    %958 = vmatprep.subr.mxu0 0.0
    %959 = vmatpush1.msra.mxu0 0.0
    %960 = vmatprep.subr.mxu0 0.0
    %961 = vmatpush1.msra.mxu0 0.0
    %962 = vmatprep.subr.mxu0 0.0
    %963 = vmatpush1.msra.mxu0 0.0
    %964 = vmatprep.subr.mxu0 0.0
    %965 = vmatpush1.msra.mxu0 0.0
    %966 = vmatprep.subr.mxu0 0.0
    %967 = vmatpush1.msra.mxu0 0.0
    %968 = vmatprep.subr.mxu0 0.0
    %969 = vmatpush1.msra.mxu0 0.0
    %970 = vmatprep.subr.mxu0 0.0
    %971 = vmatpush1.msra.mxu0 0.0
    %972 = vmatprep.subr.mxu0 0.0
    %973 = vmatpush1.msra.mxu0 0.0
    %974 = vmatprep.subr.mxu0 0.0
    %975 = vmatpush1.msra.mxu0 0.0
    %976 = vmatprep.subr.mxu0 0.0
    %977 = vmatpush1.msra.mxu0 0.0
    %978 = vmatprep.mubr.f32.mxu0 0.0
    %979 = vmatmul.mubr.f32.gmra.mrb[0].mxu0 %v841
    %v980 = vpop.f32.mrb[0].mxu0
    %v981 = vadd.f32 0.0, %v980
    %v982 = vpop.f32.mrb[0].mxu0
    %983 = vdwg.mxu0
    %v984 = vmul.f32 %v53, %v910
    %v985 = vmul.f32 %v54, %v912
    %v986 = vmul.f32 %v55, %v981
    %v987 = vadd.f32 %v984, %v985
    %v988 = vadd.f32 %v987, %v986
    %v989 = vmul.f32 %v988, 0.16666667
    %v990 = vadd.f32 %v842, %v989
    %991 = vmatprep.subr.mxu0 %v57
    %992 = vmatpush1.msra.mxu0 %v56
    %993 = vmatprep.subr.mxu0 %v60
    %994 = vmatpush1.msra.mxu0 %v59
    %995 = vmatprep.subr.mxu0 %v63
    %996 = vmatpush1.msra.mxu0 %v62
    %997 = vmatprep.subr.mxu0 %v66
    %998 = vmatpush1.msra.mxu0 %v65
    %999 = vmatprep.subr.mxu0 %v69
    %1000 = vmatpush1.msra.mxu0 %v68
    %1001 = vmatprep.subr.mxu0 %v72
    %1002 = vmatpush1.msra.mxu0 %v71
    %1003 = vmatprep.subr.mxu0 %v75
    %1004 = vmatpush1.msra.mxu0 %v74
    %1005 = vmatprep.subr.mxu0 %v78
    %1006 = vmatpush1.msra.mxu0 %v77
    %1007 = vmatprep.subr.mxu0 %v81
    %1008 = vmatpush1.msra.mxu0 %v80
    %1009 = vmatprep.subr.mxu0 %v84
    %1010 = vmatpush1.msra.mxu0 %v83
    %1011 = vmatprep.subr.mxu0 %v87
    %1012 = vmatpush1.msra.mxu0 %v86
    %1013 = vmatprep.subr.mxu0 %v90
    %1014 = vmatpush1.msra.mxu0 %v89
    %1015 = vmatprep.subr.mxu0 %v93
    %1016 = vmatpush1.msra.mxu0 %v92
    %1017 = vmatprep.subr.mxu0 %v96
    %1018 = vmatpush1.msra.mxu0 %v95
    %1019 = vmatprep.subr.mxu0 %v99
    %1020 = vmatpush1.msra.mxu0 %v98
    %1021 = vmatprep.subr.mxu0 %v102
    %1022 = vmatpush1.msra.mxu0 %v101
    %1023 = vmatprep.subr.mxu0 0.0
    %1024 = vmatpush1.msra.mxu0 0.0
    %1025 = vmatprep.subr.mxu0 0.0
    %1026 = vmatpush1.msra.mxu0 0.0
    %1027 = vmatprep.subr.mxu0 0.0
    %1028 = vmatpush1.msra.mxu0 0.0
    %1029 = vmatprep.subr.mxu0 0.0
    %1030 = vmatpush1.msra.mxu0 0.0
    %1031 = vmatprep.subr.mxu0 0.0
    %1032 = vmatpush1.msra.mxu0 0.0
    %1033 = vmatprep.subr.mxu0 0.0
    %1034 = vmatpush1.msra.mxu0 0.0
    %1035 = vmatprep.subr.mxu0 0.0
    %1036 = vmatpush1.msra.mxu0 0.0
    %1037 = vmatprep.subr.mxu0 0.0
    %1038 = vmatpush1.msra.mxu0 0.0
    %1039 = vmatprep.subr.mxu0 0.0
    %1040 = vmatpush1.msra.mxu0 0.0
    %1041 = vmatprep.subr.mxu0 0.0
    %1042 = vmatpush1.msra.mxu0 0.0
    %1043 = vmatprep.subr.mxu0 0.0
    %1044 = vmatpush1.msra.mxu0 0.0
    %1045 = vmatprep.subr.mxu0 0.0
    %1046 = vmatpush1.msra.mxu0 0.0
    %1047 = vmatprep.subr.mxu0 0.0
    %1048 = vmatpush1.msra.mxu0 0.0
    %1049 = vmatprep.subr.mxu0 0.0
    %1050 = vmatpush1.msra.mxu0 0.0
    %1051 = vmatprep.subr.mxu0 0.0
    %1052 = vmatpush1.msra.mxu0 0.0
    %1053 = vmatprep.subr.mxu0 0.0
    %1054 = vmatpush1.msra.mxu0 0.0
    %1055 = vmatprep.mubr.f32.mxu0 0.0
    %1056 = vmatmul.mubr.f32.gmra.mrb[0].mxu0 %v989
    %v1057 = vpop.f32.mrb[0].mxu0
    %v1058 = vadd.f32 0.0, %v1057
    %v1059 = vpop.f32.mrb[0].mxu0
    %v1060 = vadd.f32 0.0, %v1059
    %1061 = vdwg.mxu0
    %1062 = vmatprep.subr.mxu0 0.0
    %1063 = vmatpush1.msra.mxu0 %v58
    %1064 = vmatprep.subr.mxu0 0.0
    %1065 = vmatpush1.msra.mxu0 %v61
    %1066 = vmatprep.subr.mxu0 0.0
    %1067 = vmatpush1.msra.mxu0 %v64
    %1068 = vmatprep.subr.mxu0 0.0
    %1069 = vmatpush1.msra.mxu0 %v67
    %1070 = vmatprep.subr.mxu0 0.0
    %1071 = vmatpush1.msra.mxu0 %v70
    %1072 = vmatprep.subr.mxu0 0.0
    %1073 = vmatpush1.msra.mxu0 %v73
    %1074 = vmatprep.subr.mxu0 0.0
    %1075 = vmatpush1.msra.mxu0 %v76
    %1076 = vmatprep.subr.mxu0 0.0
    %1077 = vmatpush1.msra.mxu0 %v79
    %1078 = vmatprep.subr.mxu0 0.0
    %1079 = vmatpush1.msra.mxu0 %v82
    %1080 = vmatprep.subr.mxu0 0.0
    %1081 = vmatpush1.msra.mxu0 %v85
    %1082 = vmatprep.subr.mxu0 0.0
    %1083 = vmatpush1.msra.mxu0 %v88
    %1084 = vmatprep.subr.mxu0 0.0
    %1085 = vmatpush1.msra.mxu0 %v91
    %1086 = vmatprep.subr.mxu0 0.0
    %1087 = vmatpush1.msra.mxu0 %v94
    %1088 = vmatprep.subr.mxu0 0.0
    %1089 = vmatpush1.msra.mxu0 %v97
    %1090 = vmatprep.subr.mxu0 0.0
    %1091 = vmatpush1.msra.mxu0 %v100
    %1092 = vmatprep.subr.mxu0 0.0
    %1093 = vmatpush1.msra.mxu0 %v103
    %1094 = vmatprep.subr.mxu0 0.0
    %1095 = vmatpush1.msra.mxu0 0.0
    %1096 = vmatprep.subr.mxu0 0.0
    %1097 = vmatpush1.msra.mxu0 0.0
    %1098 = vmatprep.subr.mxu0 0.0
    %1099 = vmatpush1.msra.mxu0 0.0
    %1100 = vmatprep.subr.mxu0 0.0
    %1101 = vmatpush1.msra.mxu0 0.0
    %1102 = vmatprep.subr.mxu0 0.0
    %1103 = vmatpush1.msra.mxu0 0.0
    %1104 = vmatprep.subr.mxu0 0.0
    %1105 = vmatpush1.msra.mxu0 0.0
    %1106 = vmatprep.subr.mxu0 0.0
    %1107 = vmatpush1.msra.mxu0 0.0
    %1108 = vmatprep.subr.mxu0 0.0
    %1109 = vmatpush1.msra.mxu0 0.0
    %1110 = vmatprep.subr.mxu0 0.0
    %1111 = vmatpush1.msra.mxu0 0.0
    %1112 = vmatprep.subr.mxu0 0.0
    %1113 = vmatpush1.msra.mxu0 0.0
    %1114 = vmatprep.subr.mxu0 0.0
    %1115 = vmatpush1.msra.mxu0 0.0
    %1116 = vmatprep.subr.mxu0 0.0
    %1117 = vmatpush1.msra.mxu0 0.0
    %1118 = vmatprep.subr.mxu0 0.0
    %1119 = vmatpush1.msra.mxu0 0.0
    %1120 = vmatprep.subr.mxu0 0.0
    %1121 = vmatpush1.msra.mxu0 0.0
    %1122 = vmatprep.subr.mxu0 0.0
    %1123 = vmatpush1.msra.mxu0 0.0
    %1124 = vmatprep.subr.mxu0 0.0
    %1125 = vmatpush1.msra.mxu0 0.0
    %1126 = vmatprep.mubr.f32.mxu0 0.0
    %1127 = vmatmul.mubr.f32.gmra.mrb[0].mxu0 %v989
    %v1128 = vpop.f32.mrb[0].mxu0
    %v1129 = vadd.f32 0.0, %v1128
    %v1130 = vpop.f32.mrb[0].mxu0
    %1131 = vdwg.mxu0
    %v1132 = vmul.f32 %v53, %v1058
    %v1133 = vmul.f32 %v54, %v1060
    %v1134 = vmul.f32 %v55, %v1129
    %v1135 = vadd.f32 %v1132, %v1133
    %v1136 = vadd.f32 %v1135, %v1134
    %v1137 = vmul.f32 %v1136, 0.14285715
    %v1138 = vadd.f32 %v990, %v1137
    %1139 = vmatprep.subr.mxu0 %v57
    %1140 = vmatpush1.msra.mxu0 %v56
    %1141 = vmatprep.subr.mxu0 %v60
    %1142 = vmatpush1.msra.mxu0 %v59
    %1143 = vmatprep.subr.mxu0 %v63
    %1144 = vmatpush1.msra.mxu0 %v62
    %1145 = vmatprep.subr.mxu0 %v66
    %1146 = vmatpush1.msra.mxu0 %v65
    %1147 = vmatprep.subr.mxu0 %v69
    %1148 = vmatpush1.msra.mxu0 %v68
    %1149 = vmatprep.subr.mxu0 %v72
    %1150 = vmatpush1.msra.mxu0 %v71
    %1151 = vmatprep.subr.mxu0 %v75
    %1152 = vmatpush1.msra.mxu0 %v74
    %1153 = vmatprep.subr.mxu0 %v78
    %1154 = vmatpush1.msra.mxu0 %v77
    %1155 = vmatprep.subr.mxu0 %v81
    %1156 = vmatpush1.msra.mxu0 %v80
    %1157 = vmatprep.subr.mxu0 %v84
    %1158 = vmatpush1.msra.mxu0 %v83
    %1159 = vmatprep.subr.mxu0 %v87
    %1160 = vmatpush1.msra.mxu0 %v86
    %1161 = vmatprep.subr.mxu0 %v90
    %1162 = vmatpush1.msra.mxu0 %v89
    %1163 = vmatprep.subr.mxu0 %v93
    %1164 = vmatpush1.msra.mxu0 %v92
    %1165 = vmatprep.subr.mxu0 %v96
    %1166 = vmatpush1.msra.mxu0 %v95
    %1167 = vmatprep.subr.mxu0 %v99
    %1168 = vmatpush1.msra.mxu0 %v98
    %1169 = vmatprep.subr.mxu0 %v102
    %1170 = vmatpush1.msra.mxu0 %v101
    %1171 = vmatprep.subr.mxu0 0.0
    %1172 = vmatpush1.msra.mxu0 0.0
    %1173 = vmatprep.subr.mxu0 0.0
    %1174 = vmatpush1.msra.mxu0 0.0
    %1175 = vmatprep.subr.mxu0 0.0
    %1176 = vmatpush1.msra.mxu0 0.0
    %1177 = vmatprep.subr.mxu0 0.0
    %1178 = vmatpush1.msra.mxu0 0.0
    %1179 = vmatprep.subr.mxu0 0.0
    %1180 = vmatpush1.msra.mxu0 0.0
    %1181 = vmatprep.subr.mxu0 0.0
    %1182 = vmatpush1.msra.mxu0 0.0
    %1183 = vmatprep.subr.mxu0 0.0
    %1184 = vmatpush1.msra.mxu0 0.0
    %1185 = vmatprep.subr.mxu0 0.0
    %1186 = vmatpush1.msra.mxu0 0.0
    %1187 = vmatprep.subr.mxu0 0.0
    %1188 = vmatpush1.msra.mxu0 0.0
    %1189 = vmatprep.subr.mxu0 0.0
    %1190 = vmatpush1.msra.mxu0 0.0
    %1191 = vmatprep.subr.mxu0 0.0
    %1192 = vmatpush1.msra.mxu0 0.0
    %1193 = vmatprep.subr.mxu0 0.0
    %1194 = vmatpush1.msra.mxu0 0.0
    %1195 = vmatprep.subr.mxu0 0.0
    %1196 = vmatpush1.msra.mxu0 0.0
    %1197 = vmatprep.subr.mxu0 0.0
    %1198 = vmatpush1.msra.mxu0 0.0
    %1199 = vmatprep.subr.mxu0 0.0
    %1200 = vmatpush1.msra.mxu0 0.0
    %1201 = vmatprep.subr.mxu0 0.0
    %1202 = vmatpush1.msra.mxu0 0.0
    %1203 = vmatprep.mubr.f32.mxu0 0.0
    %1204 = vmatmul.mubr.f32.gmra.mrb[0].mxu0 %v1137
    %v1205 = vpop.f32.mrb[0].mxu0
    %v1206 = vadd.f32 0.0, %v1205
    %v1207 = vpop.f32.mrb[0].mxu0
    %v1208 = vadd.f32 0.0, %v1207
    %1209 = vdwg.mxu0
    %1210 = vmatprep.subr.mxu0 0.0
    %1211 = vmatpush1.msra.mxu0 %v58
    %1212 = vmatprep.subr.mxu0 0.0
    %1213 = vmatpush1.msra.mxu0 %v61
    %1214 = vmatprep.subr.mxu0 0.0
    %1215 = vmatpush1.msra.mxu0 %v64
    %1216 = vmatprep.subr.mxu0 0.0
    %1217 = vmatpush1.msra.mxu0 %v67
    %1218 = vmatprep.subr.mxu0 0.0
    %1219 = vmatpush1.msra.mxu0 %v70
    %1220 = vmatprep.subr.mxu0 0.0
    %1221 = vmatpush1.msra.mxu0 %v73
    %1222 = vmatprep.subr.mxu0 0.0
    %1223 = vmatpush1.msra.mxu0 %v76
    %1224 = vmatprep.subr.mxu0 0.0
    %1225 = vmatpush1.msra.mxu0 %v79
    %1226 = vmatprep.subr.mxu0 0.0
    %1227 = vmatpush1.msra.mxu0 %v82
    %1228 = vmatprep.subr.mxu0 0.0
    %1229 = vmatpush1.msra.mxu0 %v85
    %1230 = vmatprep.subr.mxu0 0.0
    %1231 = vmatpush1.msra.mxu0 %v88
    %1232 = vmatprep.subr.mxu0 0.0
    %1233 = vmatpush1.msra.mxu0 %v91
    %1234 = vmatprep.subr.mxu0 0.0
    %1235 = vmatpush1.msra.mxu0 %v94
    %1236 = vmatprep.subr.mxu0 0.0
    %1237 = vmatpush1.msra.mxu0 %v97
    %1238 = vmatprep.subr.mxu0 0.0
    %1239 = vmatpush1.msra.mxu0 %v100
    %1240 = vmatprep.subr.mxu0 0.0
    %1241 = vmatpush1.msra.mxu0 %v103
    %1242 = vmatprep.subr.mxu0 0.0
    %1243 = vmatpush1.msra.mxu0 0.0
    %1244 = vmatprep.subr.mxu0 0.0
    %1245 = vmatpush1.msra.mxu0 0.0
    %1246 = vmatprep.subr.mxu0 0.0
    %1247 = vmatpush1.msra.mxu0 0.0
    %1248 = vmatprep.subr.mxu0 0.0
    %1249 = vmatpush1.msra.mxu0 0.0
    %1250 = vmatprep.subr.mxu0 0.0
    %1251 = vmatpush1.msra.mxu0 0.0
    %1252 = vmatprep.subr.mxu0 0.0
    %1253 = vmatpush1.msra.mxu0 0.0
    %1254 = vmatprep.subr.mxu0 0.0
    %1255 = vmatpush1.msra.mxu0 0.0
    %1256 = vmatprep.subr.mxu0 0.0
    %1257 = vmatpush1.msra.mxu0 0.0
    %1258 = vmatprep.subr.mxu0 0.0
    %1259 = vmatpush1.msra.mxu0 0.0
    %1260 = vmatprep.subr.mxu0 0.0
    %1261 = vmatpush1.msra.mxu0 0.0
    %1262 = vmatprep.subr.mxu0 0.0
    %1263 = vmatpush1.msra.mxu0 0.0
    %1264 = vmatprep.subr.mxu0 0.0
    %1265 = vmatpush1.msra.mxu0 0.0
    %1266 = vmatprep.subr.mxu0 0.0
    %1267 = vmatpush1.msra.mxu0 0.0
    %1268 = vmatprep.subr.mxu0 0.0
    %1269 = vmatpush1.msra.mxu0 0.0
    %1270 = vmatprep.subr.mxu0 0.0
    %1271 = vmatpush1.msra.mxu0 0.0
    %1272 = vmatprep.subr.mxu0 0.0
    %1273 = vmatpush1.msra.mxu0 0.0
    %1274 = vmatprep.mubr.f32.mxu0 0.0
    %1275 = vmatmul.mubr.f32.gmra.mrb[0].mxu0 %v1137
    %v1276 = vpop.f32.mrb[0].mxu0
    %v1277 = vadd.f32 0.0, %v1276
    %v1278 = vpop.f32.mrb[0].mxu0
    %1279 = vdwg.mxu0
    %v1280 = vmul.f32 %v53, %v1206
    %v1281 = vmul.f32 %v54, %v1208
    %v1282 = vmul.f32 %v55, %v1277
    %v1283 = vadd.f32 %v1280, %v1281
    %v1284 = vadd.f32 %v1283, %v1282
    %v1285 = vmul.f32 %v1284, 0.125
    %v1286 = vadd.f32 %v1138, %v1285
    %1287 = vmatprep.subr.mxu0 %v57
    %1288 = vmatpush1.msra.mxu0 %v56
    %1289 = vmatprep.subr.mxu0 %v60
    %1290 = vmatpush1.msra.mxu0 %v59
    %1291 = vmatprep.subr.mxu0 %v63
    %1292 = vmatpush1.msra.mxu0 %v62
    %1293 = vmatprep.subr.mxu0 %v66
    %1294 = vmatpush1.msra.mxu0 %v65
    %1295 = vmatprep.subr.mxu0 %v69
    %1296 = vmatpush1.msra.mxu0 %v68
    %1297 = vmatprep.subr.mxu0 %v72
    %1298 = vmatpush1.msra.mxu0 %v71
    %1299 = vmatprep.subr.mxu0 %v75
    %1300 = vmatpush1.msra.mxu0 %v74
    %1301 = vmatprep.subr.mxu0 %v78
    %1302 = vmatpush1.msra.mxu0 %v77
    %1303 = vmatprep.subr.mxu0 %v81
    %1304 = vmatpush1.msra.mxu0 %v80
    %1305 = vmatprep.subr.mxu0 %v84
    %1306 = vmatpush1.msra.mxu0 %v83
    %1307 = vmatprep.subr.mxu0 %v87
    %1308 = vmatpush1.msra.mxu0 %v86
    %1309 = vmatprep.subr.mxu0 %v90
    %1310 = vmatpush1.msra.mxu0 %v89
    %1311 = vmatprep.subr.mxu0 %v93
    %1312 = vmatpush1.msra.mxu0 %v92
    %1313 = vmatprep.subr.mxu0 %v96
    %1314 = vmatpush1.msra.mxu0 %v95
    %1315 = vmatprep.subr.mxu0 %v99
    %1316 = vmatpush1.msra.mxu0 %v98
    %1317 = vmatprep.subr.mxu0 %v102
    %1318 = vmatpush1.msra.mxu0 %v101
    %1319 = vmatprep.subr.mxu0 0.0
    %1320 = vmatpush1.msra.mxu0 0.0
    %1321 = vmatprep.subr.mxu0 0.0
    %1322 = vmatpush1.msra.mxu0 0.0
    %1323 = vmatprep.subr.mxu0 0.0
    %1324 = vmatpush1.msra.mxu0 0.0
    %1325 = vmatprep.subr.mxu0 0.0
    %1326 = vmatpush1.msra.mxu0 0.0
    %1327 = vmatprep.subr.mxu0 0.0
    %1328 = vmatpush1.msra.mxu0 0.0
    %1329 = vmatprep.subr.mxu0 0.0
    %1330 = vmatpush1.msra.mxu0 0.0
    %1331 = vmatprep.subr.mxu0 0.0
    %1332 = vmatpush1.msra.mxu0 0.0
    %1333 = vmatprep.subr.mxu0 0.0
    %1334 = vmatpush1.msra.mxu0 0.0
    %1335 = vmatprep.subr.mxu0 0.0
    %1336 = vmatpush1.msra.mxu0 0.0
    %1337 = vmatprep.subr.mxu0 0.0
    %1338 = vmatpush1.msra.mxu0 0.0
    %1339 = vmatprep.subr.mxu0 0.0
    %1340 = vmatpush1.msra.mxu0 0.0
    %1341 = vmatprep.subr.mxu0 0.0
    %1342 = vmatpush1.msra.mxu0 0.0
    %1343 = vmatprep.subr.mxu0 0.0
    %1344 = vmatpush1.msra.mxu0 0.0
    %1345 = vmatprep.subr.mxu0 0.0
    %1346 = vmatpush1.msra.mxu0 0.0
    %1347 = vmatprep.subr.mxu0 0.0
    %1348 = vmatpush1.msra.mxu0 0.0
    %1349 = vmatprep.subr.mxu0 0.0
    %1350 = vmatpush1.msra.mxu0 0.0
    %1351 = vmatprep.mubr.f32.mxu0 0.0
    %1352 = vmatmul.mubr.f32.gmra.mrb[0].mxu0 %v1285
    %v1353 = vpop.f32.mrb[0].mxu0
    %v1354 = vadd.f32 0.0, %v1353
    %v1355 = vpop.f32.mrb[0].mxu0
    %v1356 = vadd.f32 0.0, %v1355
    %1357 = vdwg.mxu0
    %1358 = vmatprep.subr.mxu0 0.0
    %1359 = vmatpush1.msra.mxu0 %v58
    %1360 = vmatprep.subr.mxu0 0.0
    %1361 = vmatpush1.msra.mxu0 %v61
    %1362 = vmatprep.subr.mxu0 0.0
    %1363 = vmatpush1.msra.mxu0 %v64
    %1364 = vmatprep.subr.mxu0 0.0
    %1365 = vmatpush1.msra.mxu0 %v67
    %1366 = vmatprep.subr.mxu0 0.0
    %1367 = vmatpush1.msra.mxu0 %v70
    %1368 = vmatprep.subr.mxu0 0.0
    %1369 = vmatpush1.msra.mxu0 %v73
    %1370 = vmatprep.subr.mxu0 0.0
    %1371 = vmatpush1.msra.mxu0 %v76
    %1372 = vmatprep.subr.mxu0 0.0
    %1373 = vmatpush1.msra.mxu0 %v79
    %1374 = vmatprep.subr.mxu0 0.0
    %1375 = vmatpush1.msra.mxu0 %v82
    %1376 = vmatprep.subr.mxu0 0.0
    %1377 = vmatpush1.msra.mxu0 %v85
    %1378 = vmatprep.subr.mxu0 0.0
    %1379 = vmatpush1.msra.mxu0 %v88
    %1380 = vmatprep.subr.mxu0 0.0
    %1381 = vmatpush1.msra.mxu0 %v91
    %1382 = vmatprep.subr.mxu0 0.0
    %1383 = vmatpush1.msra.mxu0 %v94
    %1384 = vmatprep.subr.mxu0 0.0
    %1385 = vmatpush1.msra.mxu0 %v97
    %1386 = vmatprep.subr.mxu0 0.0
    %1387 = vmatpush1.msra.mxu0 %v100
    %1388 = vmatprep.subr.mxu0 0.0
    %1389 = vmatpush1.msra.mxu0 %v103
    %1390 = vmatprep.subr.mxu0 0.0
    %1391 = vmatpush1.msra.mxu0 0.0
    %1392 = vmatprep.subr.mxu0 0.0
    %1393 = vmatpush1.msra.mxu0 0.0
    %1394 = vmatprep.subr.mxu0 0.0
    %1395 = vmatpush1.msra.mxu0 0.0
    %1396 = vmatprep.subr.mxu0 0.0
    %1397 = vmatpush1.msra.mxu0 0.0
    %1398 = vmatprep.subr.mxu0 0.0
    %1399 = vmatpush1.msra.mxu0 0.0
    %1400 = vmatprep.subr.mxu0 0.0
    %1401 = vmatpush1.msra.mxu0 0.0
    %1402 = vmatprep.subr.mxu0 0.0
    %1403 = vmatpush1.msra.mxu0 0.0
    %1404 = vmatprep.subr.mxu0 0.0
    %1405 = vmatpush1.msra.mxu0 0.0
    %1406 = vmatprep.subr.mxu0 0.0
    %1407 = vmatpush1.msra.mxu0 0.0
    %1408 = vmatprep.subr.mxu0 0.0
    %1409 = vmatpush1.msra.mxu0 0.0
    %1410 = vmatprep.subr.mxu0 0.0
    %1411 = vmatpush1.msra.mxu0 0.0
    %1412 = vmatprep.subr.mxu0 0.0
    %1413 = vmatpush1.msra.mxu0 0.0
    %1414 = vmatprep.subr.mxu0 0.0
    %1415 = vmatpush1.msra.mxu0 0.0
    %1416 = vmatprep.subr.mxu0 0.0
    %1417 = vmatpush1.msra.mxu0 0.0
    %1418 = vmatprep.subr.mxu0 0.0
    %1419 = vmatpush1.msra.mxu0 0.0
    %1420 = vmatprep.subr.mxu0 0.0
    %1421 = vmatpush1.msra.mxu0 0.0
    %1422 = vmatprep.mubr.f32.mxu0 0.0
    %1423 = vmatmul.mubr.f32.gmra.mrb[0].mxu0 %v1285
    %v1424 = vpop.f32.mrb[0].mxu0
    %v1425 = vadd.f32 0.0, %v1424
    %v1426 = vpop.f32.mrb[0].mxu0
    %1427 = vdwg.mxu0
    %v1428 = vmul.f32 %v53, %v1354
    %v1429 = vmul.f32 %v54, %v1356
    %v1430 = vmul.f32 %v55, %v1425
    %v1431 = vadd.f32 %v1428, %v1429
    %v1432 = vadd.f32 %v1431, %v1430
    %v1433 = vmul.f32 %v1432, 0.11111111
    %v1434 = vadd.f32 %v1286, %v1433
    %1435 = vmatprep.subr.mxu0 %v57
    %1436 = vmatpush1.msra.mxu0 %v56
    %1437 = vmatprep.subr.mxu0 %v60
    %1438 = vmatpush1.msra.mxu0 %v59
    %1439 = vmatprep.subr.mxu0 %v63
    %1440 = vmatpush1.msra.mxu0 %v62
    %1441 = vmatprep.subr.mxu0 %v66
    %1442 = vmatpush1.msra.mxu0 %v65
    %1443 = vmatprep.subr.mxu0 %v69
    %1444 = vmatpush1.msra.mxu0 %v68
    %1445 = vmatprep.subr.mxu0 %v72
    %1446 = vmatpush1.msra.mxu0 %v71
    %1447 = vmatprep.subr.mxu0 %v75
    %1448 = vmatpush1.msra.mxu0 %v74
    %1449 = vmatprep.subr.mxu0 %v78
    %1450 = vmatpush1.msra.mxu0 %v77
    %1451 = vmatprep.subr.mxu0 %v81
    %1452 = vmatpush1.msra.mxu0 %v80
    %1453 = vmatprep.subr.mxu0 %v84
    %1454 = vmatpush1.msra.mxu0 %v83
    %1455 = vmatprep.subr.mxu0 %v87
    %1456 = vmatpush1.msra.mxu0 %v86
    %1457 = vmatprep.subr.mxu0 %v90
    %1458 = vmatpush1.msra.mxu0 %v89
    %1459 = vmatprep.subr.mxu0 %v93
    %1460 = vmatpush1.msra.mxu0 %v92
    %1461 = vmatprep.subr.mxu0 %v96
    %1462 = vmatpush1.msra.mxu0 %v95
    %1463 = vmatprep.subr.mxu0 %v99
    %1464 = vmatpush1.msra.mxu0 %v98
    %1465 = vmatprep.subr.mxu0 %v102
    %1466 = vmatpush1.msra.mxu0 %v101
    %1467 = vmatprep.subr.mxu0 0.0
    %1468 = vmatpush1.msra.mxu0 0.0
    %1469 = vmatprep.subr.mxu0 0.0
    %1470 = vmatpush1.msra.mxu0 0.0
    %1471 = vmatprep.subr.mxu0 0.0
    %1472 = vmatpush1.msra.mxu0 0.0
    %1473 = vmatprep.subr.mxu0 0.0
    %1474 = vmatpush1.msra.mxu0 0.0
    %1475 = vmatprep.subr.mxu0 0.0
    %1476 = vmatpush1.msra.mxu0 0.0
    %1477 = vmatprep.subr.mxu0 0.0
    %1478 = vmatpush1.msra.mxu0 0.0
    %1479 = vmatprep.subr.mxu0 0.0
    %1480 = vmatpush1.msra.mxu0 0.0
    %1481 = vmatprep.subr.mxu0 0.0
    %1482 = vmatpush1.msra.mxu0 0.0
    %1483 = vmatprep.subr.mxu0 0.0
    %1484 = vmatpush1.msra.mxu0 0.0
    %1485 = vmatprep.subr.mxu0 0.0
    %1486 = vmatpush1.msra.mxu0 0.0
    %1487 = vmatprep.subr.mxu0 0.0
    %1488 = vmatpush1.msra.mxu0 0.0
    %1489 = vmatprep.subr.mxu0 0.0
    %1490 = vmatpush1.msra.mxu0 0.0
    %1491 = vmatprep.subr.mxu0 0.0
    %1492 = vmatpush1.msra.mxu0 0.0
    %1493 = vmatprep.subr.mxu0 0.0
    %1494 = vmatpush1.msra.mxu0 0.0
    %1495 = vmatprep.subr.mxu0 0.0
    %1496 = vmatpush1.msra.mxu0 0.0
    %1497 = vmatprep.subr.mxu0 0.0
    %1498 = vmatpush1.msra.mxu0 0.0
    %1499 = vmatprep.mubr.f32.mxu0 0.0
    %1500 = vmatmul.mubr.f32.gmra.mrb[0].mxu0 %v1433
    %v1501 = vpop.f32.mrb[0].mxu0
    %v1502 = vadd.f32 0.0, %v1501
    %v1503 = vpop.f32.mrb[0].mxu0
    %v1504 = vadd.f32 0.0, %v1503
    %1505 = vdwg.mxu0
    %1506 = vmatprep.subr.mxu0 0.0
    %1507 = vmatpush1.msra.mxu0 %v58
    %1508 = vmatprep.subr.mxu0 0.0
    %1509 = vmatpush1.msra.mxu0 %v61
    %1510 = vmatprep.subr.mxu0 0.0
    %1511 = vmatpush1.msra.mxu0 %v64
    %1512 = vmatprep.subr.mxu0 0.0
    %1513 = vmatpush1.msra.mxu0 %v67
    %1514 = vmatprep.subr.mxu0 0.0
    %1515 = vmatpush1.msra.mxu0 %v70
    %1516 = vmatprep.subr.mxu0 0.0
    %1517 = vmatpush1.msra.mxu0 %v73
    %1518 = vmatprep.subr.mxu0 0.0
    %1519 = vmatpush1.msra.mxu0 %v76
    %1520 = vmatprep.subr.mxu0 0.0
    %1521 = vmatpush1.msra.mxu0 %v79
    %1522 = vmatprep.subr.mxu0 0.0
    %1523 = vmatpush1.msra.mxu0 %v82
    %1524 = vmatprep.subr.mxu0 0.0
    %1525 = vmatpush1.msra.mxu0 %v85
    %1526 = vmatprep.subr.mxu0 0.0
    %1527 = vmatpush1.msra.mxu0 %v88
    %1528 = vmatprep.subr.mxu0 0.0
    %1529 = vmatpush1.msra.mxu0 %v91
    %1530 = vmatprep.subr.mxu0 0.0
    %1531 = vmatpush1.msra.mxu0 %v94
    %1532 = vmatprep.subr.mxu0 0.0
    %1533 = vmatpush1.msra.mxu0 %v97
    %1534 = vmatprep.subr.mxu0 0.0
    %1535 = vmatpush1.msra.mxu0 %v100
    %1536 = vmatprep.subr.mxu0 0.0
    %1537 = vmatpush1.msra.mxu0 %v103
    %1538 = vmatprep.subr.mxu0 0.0
    %1539 = vmatpush1.msra.mxu0 0.0
    %1540 = vmatprep.subr.mxu0 0.0
    %1541 = vmatpush1.msra.mxu0 0.0
    %1542 = vmatprep.subr.mxu0 0.0
    %1543 = vmatpush1.msra.mxu0 0.0
    %1544 = vmatprep.subr.mxu0 0.0
    %1545 = vmatpush1.msra.mxu0 0.0
    %1546 = vmatprep.subr.mxu0 0.0
    %1547 = vmatpush1.msra.mxu0 0.0
    %1548 = vmatprep.subr.mxu0 0.0
    %1549 = vmatpush1.msra.mxu0 0.0
    %1550 = vmatprep.subr.mxu0 0.0
    %1551 = vmatpush1.msra.mxu0 0.0
    %1552 = vmatprep.subr.mxu0 0.0
    %1553 = vmatpush1.msra.mxu0 0.0
    %1554 = vmatprep.subr.mxu0 0.0
    %1555 = vmatpush1.msra.mxu0 0.0
    %1556 = vmatprep.subr.mxu0 0.0
    %1557 = vmatpush1.msra.mxu0 0.0
    %1558 = vmatprep.subr.mxu0 0.0
    %1559 = vmatpush1.msra.mxu0 0.0
    %1560 = vmatprep.subr.mxu0 0.0
    %1561 = vmatpush1.msra.mxu0 0.0
    %1562 = vmatprep.subr.mxu0 0.0
    %1563 = vmatpush1.msra.mxu0 0.0
    %1564 = vmatprep.subr.mxu0 0.0
    %1565 = vmatpush1.msra.mxu0 0.0
    %1566 = vmatprep.subr.mxu0 0.0
    %1567 = vmatpush1.msra.mxu0 0.0
    %1568 = vmatprep.subr.mxu0 0.0
    %1569 = vmatpush1.msra.mxu0 0.0
    %1570 = vmatprep.mubr.f32.mxu0 0.0
    %1571 = vmatmul.mubr.f32.gmra.mrb[0].mxu0 %v1433
    %v1572 = vpop.f32.mrb[0].mxu0
    %v1573 = vadd.f32 0.0, %v1572
    %v1574 = vpop.f32.mrb[0].mxu0
    %1575 = vdwg.mxu0
    %v1576 = vmul.f32 %v53, %v1502
    %v1577 = vmul.f32 %v54, %v1504
    %v1578 = vmul.f32 %v55, %v1573
    %v1579 = vadd.f32 %v1576, %v1577
    %v1580 = vadd.f32 %v1579, %v1578
    %v1581 = vmul.f32 %v1580, 0.1
    %v1582 = vadd.f32 %v1434, %v1581
    %1583 = vst [vmem:[#allocation8] sm:$0xff] %v1582
    // Predicated region
    $region26: #{tpu_custom_call.1} parent=1 // pred_check
      _
    $region27: #{tpu_custom_call.1} parent=1 // pred_check_branch
      %1585 = sbr.rel (0) target = $region29
    $region28: #{tpu_custom_call.1} parent=1 // pred_region
      %s1587 = ssub.s32 128, 128
      %1588 = vsyncadd [#allocation4], %s1587
      %s1590 = sshll.u32 [#allocation8], 4
      %s1591 = int_to_ptr.vmem [resolvable:$true] %s1590
      %1593 = dma.vmem_to_hbm [thread:$0]  %s1591, 128, %s3, [#allocation4]
    $region29: #{tpu_custom_call.1} parent=1 // pred_fallthru
      _
    // Predicated region
    $region30: #{tpu_custom_call.1} parent=1 // pred_check
      _
    $region31: #{tpu_custom_call.1} parent=1 // pred_check_branch
      %1595 = sbr.rel (0) target = $region33
    $region32: #{tpu_custom_call.1} parent=1 // pred_region
      %1596 = dma.done [#allocation4], 128
    $region33: #{tpu_custom_call.1} parent=1 // pred_fallthru
      _
    %1597 = vsyncpa [#allocation3], 1
    %1598 = vsyncpa [#allocation6], 1
    %1599 = vsyncpa [#allocation4], 1

</llo_original>
